<compile_context>
chip_gen: v5e
topology: v5e:2x2
jax: 0.10.0
libtpu: 0.0.40
codegen_flags: <defaults>
</compile_context>

<pallas_src>
import jax
import jax.numpy as jnp
from jax import lax
from jax.experimental import pallas as pl
from jax.experimental.pallas import tpu as pltpu


def _sigmoid(x):
    return 1.0 / (1.0 + jnp.exp(-x))


def deepsrgm_kernel(emb_ref,      # (TC*Bp, E)  bf16  VMEM  time-major flattened chunk
                    attb_ref,     # (T,)        f32   SMEM  per-timestep attention bias
                    wih_ref,      # (E, 4H)     bf16  VMEM  W_ih^T (gate order i,f,g,o)
                    whh_ref,      # (H, 4H)     bf16  VMEM  W_hh^T
                    bg_ref,       # (1, 4H)     f32   VMEM  b_ih + b_hh
                    attw_ref,     # (1, H)      f32   VMEM  attention weight
                    fc1w_ref,     # (H, F1)     bf16  VMEM  fc1 weight^T
                    fc1b_ref,     # (1, F1)     f32   VMEM
                    fc2w_ref,     # (F1, C)     bf16  VMEM  fc2 weight^T
                    fc2b_ref,     # (1, C)      f32   VMEM
                    out_ref,      # (Bp, C)     f32   VMEM  logits
                    h_ref,        # (Bp, H)     f32   VMEM  scratch: hidden state
                    c_ref,        # (Bp, H)     f32   VMEM  scratch: cell state
                    asum_ref,     # (Bp, 1)     f32   VMEM  scratch: sum_t a_t
                    acc_ref,      # (Bp, H)     f32   VMEM  scratch: sum_t a_t*h_t
                    gx_ref):      # (TC*Bp, 4H) f32   VMEM  scratch: hoisted x@W_ih
    pid = pl.program_id(0)
    n_chunks = pl.num_programs(0)
    Bp, H = h_ref.shape
    TC = gx_ref.shape[0] // Bp

    @pl.when(pid == 0)
    def _init():
        h_ref[...] = jnp.zeros_like(h_ref)
        c_ref[...] = jnp.zeros_like(c_ref)
        asum_ref[...] = jnp.zeros_like(asum_ref)
        acc_ref[...] = jnp.zeros_like(acc_ref)

    # Hoisted input projection for the whole chunk: one MXU-dense GEMM
    # (TC*Bp, E) @ (E, 4H), bf16 inputs, f32 accumulation.
    gx_ref[...] = jnp.dot(emb_ref[...], wih_ref[...],
                          preferred_element_type=jnp.float32)

    w_hh = whh_ref[...]            # (H, 4H) bf16, VMEM-resident
    b_g = bg_ref[...]              # (1, 4H) f32
    att_w = attw_ref[...]          # (1, H)  f32
    t0 = pid * TC                  # global timestep offset of this chunk

    def step(j, carry):
        h, c, a_sum, acc = carry
        row = pl.multiple_of(j * Bp, 8)
        g_x = gx_ref[pl.ds(row, Bp), :]                            # (Bp, 4H) f32
        gates = (g_x + b_g
                 + jnp.dot(h.astype(jnp.bfloat16), w_hh,
                           preferred_element_type=jnp.float32))    # (Bp, 4H)
        i_g = _sigmoid(gates[:, 0 * H:1 * H])
        f_g = _sigmoid(gates[:, 1 * H:2 * H])
        g_g = jnp.tanh(gates[:, 2 * H:3 * H])
        o_g = _sigmoid(gates[:, 3 * H:4 * H])
        c_new = f_g * c + i_g * g_g
        h_new = o_g * jnp.tanh(c_new)
        # Online attention: a_t = exp(tanh(h_t . w + b_t));
        # result = (sum a_t h_t) / (sum a_t + eps).  Matvec done as VPU
        # multiply + lane reduction (XLU) instead of a 1-lane MXU matmul.
        eij = jnp.tanh(jnp.sum(h_new * att_w, axis=-1, keepdims=True)
                       + attb_ref[t0 + j])                         # (Bp, 1)
        a_t = jnp.exp(eij)
        return h_new, c_new, a_sum + a_t, acc + a_t * h_new

    carry0 = (h_ref[...], c_ref[...], asum_ref[...], acc_ref[...])
    h, c, a_sum, acc = lax.fori_loop(0, TC, step, carry0, unroll=4)
    h_ref[...] = h
    c_ref[...] = c
    asum_ref[...] = a_sum
    acc_ref[...] = acc

    @pl.when(pid == n_chunks - 1)
    def _finalize():
        att_out = acc_ref[...] / (asum_ref[...] + 1e-10)           # (Bp, H) f32
        z1 = (jnp.dot(att_out.astype(jnp.bfloat16), fc1w_ref[...],
                      preferred_element_type=jnp.float32)
              + fc1b_ref[...])
        z1 = jnp.maximum(z1, 0.0)                                  # ReLU; dropout = eval identity
        out_ref[...] = (jnp.dot(z1.astype(jnp.bfloat16), fc2w_ref[...],
                                preferred_element_type=jnp.float32)
                        + fc2b_ref[...])


def _choose_time_chunk(T, Bp, target):
    """Largest divisor of T <= target, preferring (tc*Bp) % 16 == 0 for bf16 tiles."""
    divisors = [tc for tc in range(1, min(target, T) + 1) if T % tc == 0]
    aligned = [tc for tc in divisors if (tc * Bp) % 16 == 0]
    return max(aligned) if aligned else max(divisors)


def _vmem_limit_bytes(TC, Bp, E, H, F1, C):
    G = 4 * H
    weights = 2 * (E * G + H * G + H * F1 + F1 * C) + 4 * (G + H + F1 + C)
    emb_buf = 2 * (TC * Bp * E * 2)          # double-buffered bf16 input chunk
    gates = TC * Bp * G * 4                  # hoisted-gates scratch
    state = 4 * (3 * Bp * H + Bp + Bp * C)
    est = weights + emb_buf + gates + state
    return int(min(56 * 2**20, max(16 * 2**20, est * 3 // 2 + (2 << 20))))


def deepsrgm_forward(x_idx, params, *, chunk_target=64):
    """x_idx: (B, T) int32 token indices -> (B, num_classes) f32 logits."""
    B, T = x_idx.shape
    E = params["embedding"].shape[1]
    H = params["w_hh_t"].shape[0]
    G = 4 * H
    F1 = params["fc1_w_t"].shape[1]
    C = params["fc2_w_t"].shape[1]

    # Pad batch to a multiple of 8 sublanes (extra rows are sliced off at the end).
    Bp = ((B + 7) // 8) * 8
    x_p = x_idx if Bp == B else jnp.pad(x_idx, ((0, Bp - B), (0, 0)))

    # Fused transpose + gather: produce the time-major, batch-flattened
    # (T*Bp, E) embedding stream directly (no extra HBM transpose pass), bf16.
    flat_idx = jnp.transpose(x_p, (1, 0)).reshape(-1)                 # (T*Bp,)
    emb_flat = jnp.take(params["embedding"], flat_idx, axis=0).astype(jnp.bfloat16)

    TC = _choose_time_chunk(T, Bp, chunk_target)
    n_chunks = T // TC

    bf16 = jnp.bfloat16
    f32 = jnp.float32
    w_ih = params["w_ih_t"].astype(bf16)
    w_hh = params["w_hh_t"].astype(bf16)
    fc1w = params["fc1_w_t"].astype(bf16)
    fc2w = params["fc2_w_t"].astype(bf16)
    b_g = params["b_gates"].astype(f32)
    att_w = params["att_w"].reshape(1, H).astype(f32)
    att_b = params["att_b"].astype(f32)
    fc1b = params["fc1_b"].astype(f32)
    fc2b = params["fc2_b"].astype(f32)

    const2 = lambda t: (0, 0)

    out = pl.pallas_call(
        deepsrgm_kernel,
        out_shape=jax.ShapeDtypeStruct((Bp, C), jnp.float32),
        grid=(n_chunks,),
        in_specs=[
            pl.BlockSpec((TC * Bp, E), lambda t: (t, 0)),                       # emb chunk
            pl.BlockSpec(memory_space=pltpu.MemorySpace.SMEM),                  # att_b (full, SMEM)
            pl.BlockSpec((E, G), const2),                                       # W_ih^T   (resident)
            pl.BlockSpec((H, G), const2),                                       # W_hh^T   (resident)
            pl.BlockSpec((1, G), const2),                                       # b_gates
            pl.BlockSpec((1, H), const2),                                       # att_w
            pl.BlockSpec((H, F1), const2),                                      # fc1_w^T
            pl.BlockSpec((1, F1), const2),                                      # fc1_b
            pl.BlockSpec((F1, C), const2),                                      # fc2_w^T
            pl.BlockSpec((1, C), const2),                                       # fc2_b
        ],
        out_specs=pl.BlockSpec((Bp, C), const2),
        scratch_shapes=[
            pltpu.VMEM((Bp, H), jnp.float32),          # h
            pltpu.VMEM((Bp, H), jnp.float32),          # c
            pltpu.VMEM((Bp, 1), jnp.float32),          # sum a_t
            pltpu.VMEM((Bp, H), jnp.float32),          # sum a_t * h_t
            pltpu.VMEM((TC * Bp, G), jnp.float32),     # hoisted gates x@W_ih
        ],
        compiler_params=pltpu.CompilerParams(
            dimension_semantics=("arbitrary",),
            vmem_limit_bytes=_vmem_limit_bytes(TC, Bp, E, H, F1, C)),
    )(emb_flat, att_b, w_ih, w_hh, b_g, att_w, fc1w, fc1b, fc2w, fc2b)

    return out[:B]


def reference_forward(x_idx, params, mm_dtype=jnp.float32):
    """Pure-JAX reference (same math as the PyTorch module, eval mode).

    mm_dtype controls the matmul input precision (bf16 matches the kernel's
    MXU inputs; accumulation is f32 either way)."""
    f32 = jnp.float32

    def dot(a, b):
        return lax.dot(a.astype(mm_dtype), b.astype(mm_dtype),
                       preferred_element_type=f32)

    emb = jnp.take(params["embedding"], x_idx, axis=0)               # (B, T, E)
    B, T, _ = emb.shape
    H = params["w_hh_t"].shape[0]

    def step(carry, x_t):
        h, c = carry
        gates = dot(x_t, params["w_ih_t"]) + dot(h, params["w_hh_t"]) + params["b_gates"]
        i = _sigmoid(gates[:, 0 * H:1 * H])
        f = _sigmoid(gates[:, 1 * H:2 * H])
        g = jnp.tanh(gates[:, 2 * H:3 * H])
        o = _sigmoid(gates[:, 3 * H:4 * H])
        c = f * c + i * g
        h = o * jnp.tanh(c)
        return (h, c), h

    (_, _), hs = lax.scan(step,
                          (jnp.zeros((B, H), f32), jnp.zeros((B, H), f32)),
                          jnp.transpose(emb, (1, 0, 2)))
    hs = jnp.transpose(hs, (1, 0, 2))                                # (B, T, H)
    eij = jnp.tanh(jnp.squeeze(hs @ params["att_w"], -1) + params["att_b"])
    a = jnp.exp(eij)
    a = a / (jnp.sum(a, axis=1, keepdims=True) + 1e-10)
    att = jnp.sum(hs * a[..., None], axis=1)                         # (B, H)
    z1 = jnp.maximum(dot(att, params["fc1_w_t"]) + params["fc1_b"], 0.0)
    return dot(z1, params["fc2_w_t"]) + params["fc2_b"]


def make_params(key, vocab_size, embedding_size, hidden_size, input_length,
                fc1_size, num_classes):
    ks = jax.random.split(key, 10)
    s = 0.1
    f32 = jnp.float32
    return {
        "embedding": jax.random.normal(ks[0], (vocab_size, embedding_size), f32) * s,
        "w_ih_t":    jax.random.normal(ks[1], (embedding_size, 4 * hidden_size), f32) * s,
        "w_hh_t":    jax.random.normal(ks[2], (hidden_size, 4 * hidden_size), f32) * s,
        "b_gates":   jax.random.normal(ks[3], (1, 4 * hidden_size), f32) * s,  # b_ih + b_hh
        "att_w":     jax.random.normal(ks[4], (hidden_size, 1), f32) * s,
        "att_b":     jax.random.normal(ks[5], (input_length,), f32) * s,
        "fc1_w_t":   jax.random.normal(ks[6], (hidden_size, fc1_size), f32) * s,
        "fc1_b":     jax.random.normal(ks[7], (1, fc1_size), f32) * s,
        "fc2_w_t":   jax.random.normal(ks[8], (fc1_size, num_classes), f32) * s,
        "fc2_b":     jax.random.normal(ks[9], (1, num_classes), f32) * s,
    }


if __name__ == "__main__":
    # Small shapes consistent with the module (scaled down from
    # input_length=5000, embedding=128, hidden=768, fc1=384, vocab=209).
    B, T = 2, 8
    VOCAB, EMB, HID, FC1, NUM_CLASSES = 16, 32, 128, 128, 10

    key = jax.random.PRNGKey(0)
    k_param, k_x = jax.random.split(key)
    params = make_params(k_param, VOCAB, EMB, HID, T, FC1, NUM_CLASSES)
    x_idx = jax.random.randint(k_x, (B, T), 0, VOCAB, dtype=jnp.int32)

    # chunk_target=4 -> two time chunks, exercising the cross-chunk state carry.
    out = jax.block_until_ready(deepsrgm_forward(x_idx, params, chunk_target=4))
    ref_bf16 = jax.block_until_ready(reference_forward(x_idx, params, jnp.bfloat16))
    ref_f32 = jax.block_until_ready(reference_forward(x_idx, params, jnp.float32))

    assert out.shape == (B, NUM_CLASSES)
    # Matched precision (bf16 MXU inputs, f32 accumulation): tight check.
    assert jnp.allclose(out, ref_bf16, rtol=1e-3, atol=1e-3), (out, ref_bf16)
    # Full-f32 reference: loose check (bf16 weight rounding).
    assert jnp.allclose(out, ref_f32, rtol=2e-2, atol=2e-2), (out, ref_f32)
    print("KERNEL_OK")
</pallas_src>

<mosaic_0001>
module attributes {stable_mosaic.version = 11 : i64} {
  func.func @deepsrgm_kernel(%arg0: i32, %arg1: memref<32x32xbf16, #tpu.memory_space<vmem>>, %arg2: memref<8xf32, #tpu.memory_space<smem>>, %arg3: memref<32x512xbf16, #tpu.memory_space<vmem>>, %arg4: memref<128x512xbf16, #tpu.memory_space<vmem>>, %arg5: memref<1x512xf32, #tpu.memory_space<vmem>>, %arg6: memref<1x128xf32, #tpu.memory_space<vmem>>, %arg7: memref<128x128xbf16, #tpu.memory_space<vmem>>, %arg8: memref<1x128xf32, #tpu.memory_space<vmem>>, %arg9: memref<128x10xbf16, #tpu.memory_space<vmem>>, %arg10: memref<1x10xf32, #tpu.memory_space<vmem>>, %arg11: memref<8x10xf32, #tpu.memory_space<vmem>>, %arg12: memref<8x128xf32, #tpu.memory_space<vmem>>, %arg13: memref<8x128xf32, #tpu.memory_space<vmem>>, %arg14: memref<8x1xf32, #tpu.memory_space<vmem>>, %arg15: memref<8x128xf32, #tpu.memory_space<vmem>>, %arg16: memref<32x512xf32, #tpu.memory_space<vmem>>) attributes {dimension_semantics = [#tpu.dimension_semantics<arbitrary>], iteration_bounds = array<i64: 2>, scalar_prefetch = 0 : i64, scratch_operands = 5 : i64, tpu.core_type = #tpu.core_type<tc>, window_params = [{transform_indices = @transform_0, window_bounds = array<i64: 32, 32>}, {transform_indices = @transform_1, window_bounds = array<i64: 8>}, {pipeline_mode = #tpu.pipeline_mode<synchronous>, transform_indices = @transform_2, window_bounds = array<i64: 32, 512>}, {pipeline_mode = #tpu.pipeline_mode<synchronous>, transform_indices = @transform_3, window_bounds = array<i64: 128, 512>}, {pipeline_mode = #tpu.pipeline_mode<synchronous>, transform_indices = @transform_4, window_bounds = array<i64: 1, 512>}, {pipeline_mode = #tpu.pipeline_mode<synchronous>, transform_indices = @transform_5, window_bounds = array<i64: 1, 128>}, {pipeline_mode = #tpu.pipeline_mode<synchronous>, transform_indices = @transform_6, window_bounds = array<i64: 128, 128>}, {pipeline_mode = #tpu.pipeline_mode<synchronous>, transform_indices = @transform_7, window_bounds = array<i64: 1, 128>}, {pipeline_mode = #tpu.pipeline_mode<synchronous>, transform_indices = @transform_8, window_bounds = array<i64: 128, 10>}, {pipeline_mode = #tpu.pipeline_mode<synchronous>, transform_indices = @transform_9, window_bounds = array<i64: 1, 10>}, {pipeline_mode = #tpu.pipeline_mode<synchronous>, transform_indices = @transform_10, window_bounds = array<i64: 8, 10>}]} {
    %c0_i32 = arith.constant 0 : i32
    %0 = arith.cmpi eq, %arg0, %c0_i32 : i32
    %1 = arith.extui %0 : i1 to i32
    %c0_i32_0 = arith.constant 0 : i32
    %2 = arith.cmpi ne, %1, %c0_i32_0 : i32
    scf.if %2 {
      %cst_83 = arith.constant 0.000000e+00 : f32
      %242 = vector.broadcast %cst_83 : f32 to vector<8x128xf32>
      %c0_84 = arith.constant 0 : index
      %c0_85 = arith.constant 0 : index
      %243 = vector.load %arg12[%c0_84, %c0_85] : memref<8x128xf32, #tpu.memory_space<vmem>>, vector<8x128xf32>
      tpu.vector_store %arg12[%c0_84, %c0_85], %242 {strides = array<i32>} : memref<8x128xf32, #tpu.memory_space<vmem>>, vector<8x128xf32>,
      %cst_86 = arith.constant 0.000000e+00 : f32
      %244 = vector.broadcast %cst_86 : f32 to vector<8x128xf32>
      %c0_87 = arith.constant 0 : index
      %c0_88 = arith.constant 0 : index
      %245 = vector.load %arg13[%c0_87, %c0_88] : memref<8x128xf32, #tpu.memory_space<vmem>>, vector<8x128xf32>
      tpu.vector_store %arg13[%c0_87, %c0_88], %244 {strides = array<i32>} : memref<8x128xf32, #tpu.memory_space<vmem>>, vector<8x128xf32>,
      %cst_89 = arith.constant 0.000000e+00 : f32
      %246 = vector.broadcast %cst_89 : f32 to vector<8x1xf32>
      %c0_90 = arith.constant 0 : index
      %c0_91 = arith.constant 0 : index
      %247 = vector.load %arg14[%c0_90, %c0_91] : memref<8x1xf32, #tpu.memory_space<vmem>>, vector<8x1xf32>
      tpu.vector_store %arg14[%c0_90, %c0_91], %246 {strides = array<i32>} : memref<8x1xf32, #tpu.memory_space<vmem>>, vector<8x1xf32>,
      %cst_92 = arith.constant 0.000000e+00 : f32
      %248 = vector.broadcast %cst_92 : f32 to vector<8x128xf32>
      %c0_93 = arith.constant 0 : index
      %c0_94 = arith.constant 0 : index
      %249 = vector.load %arg15[%c0_93, %c0_94] : memref<8x128xf32, #tpu.memory_space<vmem>>, vector<8x128xf32>
      tpu.vector_store %arg15[%c0_93, %c0_94], %248 {strides = array<i32>} : memref<8x128xf32, #tpu.memory_space<vmem>>, vector<8x128xf32>,
    } else {
    }
    %c0 = arith.constant 0 : index
    %c0_1 = arith.constant 0 : index
    %3 = vector.load %arg1[%c0, %c0_1] : memref<32x32xbf16, #tpu.memory_space<vmem>>, vector<32x32xbf16>
    %c0_2 = arith.constant 0 : index
    %c0_3 = arith.constant 0 : index
    %4 = vector.load %arg3[%c0_2, %c0_3] : memref<32x512xbf16, #tpu.memory_space<vmem>>, vector<32x512xbf16>
    %cst = arith.constant dense<0.000000e+00> : vector<32x512xf32>
    %5 = tpu.matmul %3, %4, %cst {dimension_numbers = #tpu.dot_dimension_numbers<[1], [0], [0], [1], [0, 0, 1, 1], [], []>} : vector<32x32xbf16>, vector<32x512xbf16>, vector<32x512xf32> -> vector<32x512xf32>
    %c0_4 = arith.constant 0 : index
    %c0_5 = arith.constant 0 : index
    %6 = vector.load %arg16[%c0_4, %c0_5] : memref<32x512xf32, #tpu.memory_space<vmem>>, vector<32x512xf32>
    tpu.vector_store %arg16[%c0_4, %c0_5], %5 {strides = array<i32>} : memref<32x512xf32, #tpu.memory_space<vmem>>, vector<32x512xf32>,
    %c0_6 = arith.constant 0 : index
    %c0_7 = arith.constant 0 : index
    %7 = vector.load %arg4[%c0_6, %c0_7] : memref<128x512xbf16, #tpu.memory_space<vmem>>, vector<128x512xbf16>
    %c0_8 = arith.constant 0 : index
    %c0_9 = arith.constant 0 : index
    %8 = vector.load %arg5[%c0_8, %c0_9] : memref<1x512xf32, #tpu.memory_space<vmem>>, vector<1x512xf32>
    %c0_10 = arith.constant 0 : index
    %c0_11 = arith.constant 0 : index
    %9 = vector.load %arg6[%c0_10, %c0_11] : memref<1x128xf32, #tpu.memory_space<vmem>>, vector<1x128xf32>
    %c4_i32 = arith.constant 4 : i32
    %10 = arith.muli %arg0, %c4_i32 : i32
    %c0_12 = arith.constant 0 : index
    %c0_13 = arith.constant 0 : index
    %11 = vector.load %arg12[%c0_12, %c0_13] : memref<8x128xf32, #tpu.memory_space<vmem>>, vector<8x128xf32>
    %c0_14 = arith.constant 0 : index
    %c0_15 = arith.constant 0 : index
    %12 = vector.load %arg13[%c0_14, %c0_15] : memref<8x128xf32, #tpu.memory_space<vmem>>, vector<8x128xf32>
    %c0_16 = arith.constant 0 : index
    %c0_17 = arith.constant 0 : index
    %13 = vector.load %arg14[%c0_16, %c0_17] : memref<8x1xf32, #tpu.memory_space<vmem>>, vector<8x1xf32>
    %c0_18 = arith.constant 0 : index
    %c0_19 = arith.constant 0 : index
    %14 = vector.load %arg15[%c0_18, %c0_19] : memref<8x128xf32, #tpu.memory_space<vmem>>, vector<8x128xf32>
    %c0_i32_20 = arith.constant 0 : i32
    %c8_i32 = arith.constant 8 : i32
    %15 = arith.muli %c0_i32_20, %c8_i32 : i32
    %16 = tpu.assume_multiple %15, 8 : i32
    %17 = arith.index_cast %16 : i32 to index
    %c0_21 = arith.constant 0 : index
    %18 = vector.load %arg16[%17, %c0_21] : memref<32x512xf32, #tpu.memory_space<vmem>>, vector<8x512xf32>
    %19 = vector.broadcast %8 : vector<1x512xf32> to vector<8x512xf32>
    %20 = arith.addf %18, %19 : vector<8x512xf32>
    %21 = arith.truncf %11 : vector<8x128xf32> to vector<8x128xbf16>
    %cst_22 = arith.constant dense<0.000000e+00> : vector<8x512xf32>
    %22 = tpu.matmul %21, %7, %cst_22 {dimension_numbers = #tpu.dot_dimension_numbers<[1], [0], [0], [1], [0, 0, 1, 1], [], []>} : vector<8x128xbf16>, vector<128x512xbf16>, vector<8x512xf32> -> vector<8x512xf32>
    %23 = arith.addf %20, %22 : vector<8x512xf32>
    %24 = vector.extract_strided_slice %23 {offsets = [0, 0], sizes = [8, 128], strides = [1, 1]} : vector<8x512xf32> to vector<8x128xf32>
    %cst_23 = arith.constant 0.000000e+00 : f32
    %25 = vector.broadcast %cst_23 : f32 to vector<8x128xf32>
    %26 = arith.subf %25, %24 : vector<8x128xf32>
    %27 = math.exp %26 : vector<8x128xf32>
    %cst_24 = arith.constant 1.000000e+00 : f32
    %28 = vector.broadcast %cst_24 : f32 to vector<8x128xf32>
    %29 = arith.addf %28, %27 : vector<8x128xf32>
    %cst_25 = arith.constant 1.000000e+00 : f32
    %30 = vector.broadcast %cst_25 : f32 to vector<8x128xf32>
    %31 = arith.divf %30, %29 : vector<8x128xf32>
    %32 = vector.extract_strided_slice %23 {offsets = [0, 128], sizes = [8, 128], strides = [1, 1]} : vector<8x512xf32> to vector<8x128xf32>
    %cst_26 = arith.constant 0.000000e+00 : f32
    %33 = vector.broadcast %cst_26 : f32 to vector<8x128xf32>
    %34 = arith.subf %33, %32 : vector<8x128xf32>
    %35 = math.exp %34 : vector<8x128xf32>
    %cst_27 = arith.constant 1.000000e+00 : f32
    %36 = vector.broadcast %cst_27 : f32 to vector<8x128xf32>
    %37 = arith.addf %36, %35 : vector<8x128xf32>
    %cst_28 = arith.constant 1.000000e+00 : f32
    %38 = vector.broadcast %cst_28 : f32 to vector<8x128xf32>
    %39 = arith.divf %38, %37 : vector<8x128xf32>
    %40 = vector.extract_strided_slice %23 {offsets = [0, 256], sizes = [8, 128], strides = [1, 1]} : vector<8x512xf32> to vector<8x128xf32>
    %41 = math.tanh %40 : vector<8x128xf32>
    %42 = vector.extract_strided_slice %23 {offsets = [0, 384], sizes = [8, 128], strides = [1, 1]} : vector<8x512xf32> to vector<8x128xf32>
    %cst_29 = arith.constant 0.000000e+00 : f32
    %43 = vector.broadcast %cst_29 : f32 to vector<8x128xf32>
    %44 = arith.subf %43, %42 : vector<8x128xf32>
    %45 = math.exp %44 : vector<8x128xf32>
    %cst_30 = arith.constant 1.000000e+00 : f32
    %46 = vector.broadcast %cst_30 : f32 to vector<8x128xf32>
    %47 = arith.addf %46, %45 : vector<8x128xf32>
    %cst_31 = arith.constant 1.000000e+00 : f32
    %48 = vector.broadcast %cst_31 : f32 to vector<8x128xf32>
    %49 = arith.divf %48, %47 : vector<8x128xf32>
    %50 = arith.mulf %39, %12 : vector<8x128xf32>
    %51 = arith.mulf %31, %41 : vector<8x128xf32>
    %52 = arith.addf %50, %51 : vector<8x128xf32>
    %53 = math.tanh %52 : vector<8x128xf32>
    %54 = arith.mulf %49, %53 : vector<8x128xf32>
    %55 = vector.broadcast %9 : vector<1x128xf32> to vector<8x128xf32>
    %56 = arith.mulf %54, %55 : vector<8x128xf32>
    %cst_32 = arith.constant dense<0.000000e+00> : vector<8xf32>
    %57 = vector.multi_reduction <add>, %56, %cst_32 [1] : vector<8x128xf32> to vector<8xf32>
    %58 = vector.shape_cast %57 : vector<8xf32> to vector<8x1xf32>
    %59 = arith.addi %10, %c0_i32_20 : i32
    %60 = arith.index_cast %59 : i32 to index
    %61 = memref.load %arg2[%60] : memref<8xf32, #tpu.memory_space<smem>>
    %62 = vector.broadcast %61 : f32 to vector<8x1xf32>
    %63 = arith.addf %58, %62 : vector<8x1xf32>
    %64 = math.tanh %63 : vector<8x1xf32>
    %65 = math.exp %64 : vector<8x1xf32>
    %66 = arith.addf %13, %65 : vector<8x1xf32>
    %67 = vector.broadcast %65 : vector<8x1xf32> to vector<8x128xf32>
    %68 = arith.mulf %67, %54 : vector<8x128xf32>
    %69 = arith.addf %14, %68 : vector<8x128xf32>
    %c1_i32 = arith.constant 1 : i32
    %c8_i32_33 = arith.constant 8 : i32
    %70 = arith.muli %c1_i32, %c8_i32_33 : i32
    %71 = tpu.assume_multiple %70, 8 : i32
    %72 = arith.index_cast %71 : i32 to index
    %c0_34 = arith.constant 0 : index
    %73 = vector.load %arg16[%72, %c0_34] : memref<32x512xf32, #tpu.memory_space<vmem>>, vector<8x512xf32>
    %74 = vector.broadcast %8 : vector<1x512xf32> to vector<8x512xf32>
    %75 = arith.addf %73, %74 : vector<8x512xf32>
    %76 = arith.truncf %54 : vector<8x128xf32> to vector<8x128xbf16>
    %cst_35 = arith.constant dense<0.000000e+00> : vector<8x512xf32>
    %77 = tpu.matmul %76, %7, %cst_35 {dimension_numbers = #tpu.dot_dimension_numbers<[1], [0], [0], [1], [0, 0, 1, 1], [], []>} : vector<8x128xbf16>, vector<128x512xbf16>, vector<8x512xf32> -> vector<8x512xf32>
    %78 = arith.addf %75, %77 : vector<8x512xf32>
    %79 = vector.extract_strided_slice %78 {offsets = [0, 0], sizes = [8, 128], strides = [1, 1]} : vector<8x512xf32> to vector<8x128xf32>
    %cst_36 = arith.constant 0.000000e+00 : f32
    %80 = vector.broadcast %cst_36 : f32 to vector<8x128xf32>
    %81 = arith.subf %80, %79 : vector<8x128xf32>
    %82 = math.exp %81 : vector<8x128xf32>
    %cst_37 = arith.constant 1.000000e+00 : f32
    %83 = vector.broadcast %cst_37 : f32 to vector<8x128xf32>
    %84 = arith.addf %83, %82 : vector<8x128xf32>
    %cst_38 = arith.constant 1.000000e+00 : f32
    %85 = vector.broadcast %cst_38 : f32 to vector<8x128xf32>
    %86 = arith.divf %85, %84 : vector<8x128xf32>
    %87 = vector.extract_strided_slice %78 {offsets = [0, 128], sizes = [8, 128], strides = [1, 1]} : vector<8x512xf32> to vector<8x128xf32>
    %cst_39 = arith.constant 0.000000e+00 : f32
    %88 = vector.broadcast %cst_39 : f32 to vector<8x128xf32>
    %89 = arith.subf %88, %87 : vector<8x128xf32>
    %90 = math.exp %89 : vector<8x128xf32>
    %cst_40 = arith.constant 1.000000e+00 : f32
    %91 = vector.broadcast %cst_40 : f32 to vector<8x128xf32>
    %92 = arith.addf %91, %90 : vector<8x128xf32>
    %cst_41 = arith.constant 1.000000e+00 : f32
    %93 = vector.broadcast %cst_41 : f32 to vector<8x128xf32>
    %94 = arith.divf %93, %92 : vector<8x128xf32>
    %95 = vector.extract_strided_slice %78 {offsets = [0, 256], sizes = [8, 128], strides = [1, 1]} : vector<8x512xf32> to vector<8x128xf32>
    %96 = math.tanh %95 : vector<8x128xf32>
    %97 = vector.extract_strided_slice %78 {offsets = [0, 384], sizes = [8, 128], strides = [1, 1]} : vector<8x512xf32> to vector<8x128xf32>
    %cst_42 = arith.constant 0.000000e+00 : f32
    %98 = vector.broadcast %cst_42 : f32 to vector<8x128xf32>
    %99 = arith.subf %98, %97 : vector<8x128xf32>
    %100 = math.exp %99 : vector<8x128xf32>
    %cst_43 = arith.constant 1.000000e+00 : f32
    %101 = vector.broadcast %cst_43 : f32 to vector<8x128xf32>
    %102 = arith.addf %101, %100 : vector<8x128xf32>
    %cst_44 = arith.constant 1.000000e+00 : f32
    %103 = vector.broadcast %cst_44 : f32 to vector<8x128xf32>
    %104 = arith.divf %103, %102 : vector<8x128xf32>
    %105 = arith.mulf %94, %52 : vector<8x128xf32>
    %106 = arith.mulf %86, %96 : vector<8x128xf32>
    %107 = arith.addf %105, %106 : vector<8x128xf32>
    %108 = math.tanh %107 : vector<8x128xf32>
    %109 = arith.mulf %104, %108 : vector<8x128xf32>
    %110 = vector.broadcast %9 : vector<1x128xf32> to vector<8x128xf32>
    %111 = arith.mulf %109, %110 : vector<8x128xf32>
    %cst_45 = arith.constant dense<0.000000e+00> : vector<8xf32>
    %112 = vector.multi_reduction <add>, %111, %cst_45 [1] : vector<8x128xf32> to vector<8xf32>
    %113 = vector.shape_cast %112 : vector<8xf32> to vector<8x1xf32>
    %114 = arith.addi %10, %c1_i32 : i32
    %115 = arith.index_cast %114 : i32 to index
    %116 = memref.load %arg2[%115] : memref<8xf32, #tpu.memory_space<smem>>
    %117 = vector.broadcast %116 : f32 to vector<8x1xf32>
    %118 = arith.addf %113, %117 : vector<8x1xf32>
    %119 = math.tanh %118 : vector<8x1xf32>
    %120 = math.exp %119 : vector<8x1xf32>
    %121 = arith.addf %66, %120 : vector<8x1xf32>
    %122 = vector.broadcast %120 : vector<8x1xf32> to vector<8x128xf32>
    %123 = arith.mulf %122, %109 : vector<8x128xf32>
    %124 = arith.addf %69, %123 : vector<8x128xf32>
    %c2_i32 = arith.constant 2 : i32
    %c8_i32_46 = arith.constant 8 : i32
    %125 = arith.muli %c2_i32, %c8_i32_46 : i32
    %126 = tpu.assume_multiple %125, 8 : i32
    %127 = arith.index_cast %126 : i32 to index
    %c0_47 = arith.constant 0 : index
    %128 = vector.load %arg16[%127, %c0_47] : memref<32x512xf32, #tpu.memory_space<vmem>>, vector<8x512xf32>
    %129 = vector.broadcast %8 : vector<1x512xf32> to vector<8x512xf32>
    %130 = arith.addf %128, %129 : vector<8x512xf32>
    %131 = arith.truncf %109 : vector<8x128xf32> to vector<8x128xbf16>
    %cst_48 = arith.constant dense<0.000000e+00> : vector<8x512xf32>
    %132 = tpu.matmul %131, %7, %cst_48 {dimension_numbers = #tpu.dot_dimension_numbers<[1], [0], [0], [1], [0, 0, 1, 1], [], []>} : vector<8x128xbf16>, vector<128x512xbf16>, vector<8x512xf32> -> vector<8x512xf32>
    %133 = arith.addf %130, %132 : vector<8x512xf32>
    %134 = vector.extract_strided_slice %133 {offsets = [0, 0], sizes = [8, 128], strides = [1, 1]} : vector<8x512xf32> to vector<8x128xf32>
    %cst_49 = arith.constant 0.000000e+00 : f32
    %135 = vector.broadcast %cst_49 : f32 to vector<8x128xf32>
    %136 = arith.subf %135, %134 : vector<8x128xf32>
    %137 = math.exp %136 : vector<8x128xf32>
    %cst_50 = arith.constant 1.000000e+00 : f32
    %138 = vector.broadcast %cst_50 : f32 to vector<8x128xf32>
    %139 = arith.addf %138, %137 : vector<8x128xf32>
    %cst_51 = arith.constant 1.000000e+00 : f32
    %140 = vector.broadcast %cst_51 : f32 to vector<8x128xf32>
    %141 = arith.divf %140, %139 : vector<8x128xf32>
    %142 = vector.extract_strided_slice %133 {offsets = [0, 128], sizes = [8, 128], strides = [1, 1]} : vector<8x512xf32> to vector<8x128xf32>
    %cst_52 = arith.constant 0.000000e+00 : f32
    %143 = vector.broadcast %cst_52 : f32 to vector<8x128xf32>
    %144 = arith.subf %143, %142 : vector<8x128xf32>
    %145 = math.exp %144 : vector<8x128xf32>
    %cst_53 = arith.constant 1.000000e+00 : f32
    %146 = vector.broadcast %cst_53 : f32 to vector<8x128xf32>
    %147 = arith.addf %146, %145 : vector<8x128xf32>
    %cst_54 = arith.constant 1.000000e+00 : f32
    %148 = vector.broadcast %cst_54 : f32 to vector<8x128xf32>
    %149 = arith.divf %148, %147 : vector<8x128xf32>
    %150 = vector.extract_strided_slice %133 {offsets = [0, 256], sizes = [8, 128], strides = [1, 1]} : vector<8x512xf32> to vector<8x128xf32>
    %151 = math.tanh %150 : vector<8x128xf32>
    %152 = vector.extract_strided_slice %133 {offsets = [0, 384], sizes = [8, 128], strides = [1, 1]} : vector<8x512xf32> to vector<8x128xf32>
    %cst_55 = arith.constant 0.000000e+00 : f32
    %153 = vector.broadcast %cst_55 : f32 to vector<8x128xf32>
    %154 = arith.subf %153, %152 : vector<8x128xf32>
    %155 = math.exp %154 : vector<8x128xf32>
    %cst_56 = arith.constant 1.000000e+00 : f32
    %156 = vector.broadcast %cst_56 : f32 to vector<8x128xf32>
    %157 = arith.addf %156, %155 : vector<8x128xf32>
    %cst_57 = arith.constant 1.000000e+00 : f32
    %158 = vector.broadcast %cst_57 : f32 to vector<8x128xf32>
    %159 = arith.divf %158, %157 : vector<8x128xf32>
    %160 = arith.mulf %149, %107 : vector<8x128xf32>
    %161 = arith.mulf %141, %151 : vector<8x128xf32>
    %162 = arith.addf %160, %161 : vector<8x128xf32>
    %163 = math.tanh %162 : vector<8x128xf32>
    %164 = arith.mulf %159, %163 : vector<8x128xf32>
    %165 = vector.broadcast %9 : vector<1x128xf32> to vector<8x128xf32>
    %166 = arith.mulf %164, %165 : vector<8x128xf32>
    %cst_58 = arith.constant dense<0.000000e+00> : vector<8xf32>
    %167 = vector.multi_reduction <add>, %166, %cst_58 [1] : vector<8x128xf32> to vector<8xf32>
    %168 = vector.shape_cast %167 : vector<8xf32> to vector<8x1xf32>
    %169 = arith.addi %10, %c2_i32 : i32
    %170 = arith.index_cast %169 : i32 to index
    %171 = memref.load %arg2[%170] : memref<8xf32, #tpu.memory_space<smem>>
    %172 = vector.broadcast %171 : f32 to vector<8x1xf32>
    %173 = arith.addf %168, %172 : vector<8x1xf32>
    %174 = math.tanh %173 : vector<8x1xf32>
    %175 = math.exp %174 : vector<8x1xf32>
    %176 = arith.addf %121, %175 : vector<8x1xf32>
    %177 = vector.broadcast %175 : vector<8x1xf32> to vector<8x128xf32>
    %178 = arith.mulf %177, %164 : vector<8x128xf32>
    %179 = arith.addf %124, %178 : vector<8x128xf32>
    %c3_i32 = arith.constant 3 : i32
    %c8_i32_59 = arith.constant 8 : i32
    %180 = arith.muli %c3_i32, %c8_i32_59 : i32
    %181 = tpu.assume_multiple %180, 8 : i32
    %182 = arith.index_cast %181 : i32 to index
    %c0_60 = arith.constant 0 : index
    %183 = vector.load %arg16[%182, %c0_60] : memref<32x512xf32, #tpu.memory_space<vmem>>, vector<8x512xf32>
    %184 = vector.broadcast %8 : vector<1x512xf32> to vector<8x512xf32>
    %185 = arith.addf %183, %184 : vector<8x512xf32>
    %186 = arith.truncf %164 : vector<8x128xf32> to vector<8x128xbf16>
    %cst_61 = arith.constant dense<0.000000e+00> : vector<8x512xf32>
    %187 = tpu.matmul %186, %7, %cst_61 {dimension_numbers = #tpu.dot_dimension_numbers<[1], [0], [0], [1], [0, 0, 1, 1], [], []>} : vector<8x128xbf16>, vector<128x512xbf16>, vector<8x512xf32> -> vector<8x512xf32>
    %188 = arith.addf %185, %187 : vector<8x512xf32>
    %189 = vector.extract_strided_slice %188 {offsets = [0, 0], sizes = [8, 128], strides = [1, 1]} : vector<8x512xf32> to vector<8x128xf32>
    %cst_62 = arith.constant 0.000000e+00 : f32
    %190 = vector.broadcast %cst_62 : f32 to vector<8x128xf32>
    %191 = arith.subf %190, %189 : vector<8x128xf32>
    %192 = math.exp %191 : vector<8x128xf32>
    %cst_63 = arith.constant 1.000000e+00 : f32
    %193 = vector.broadcast %cst_63 : f32 to vector<8x128xf32>
    %194 = arith.addf %193, %192 : vector<8x128xf32>
    %cst_64 = arith.constant 1.000000e+00 : f32
    %195 = vector.broadcast %cst_64 : f32 to vector<8x128xf32>
    %196 = arith.divf %195, %194 : vector<8x128xf32>
    %197 = vector.extract_strided_slice %188 {offsets = [0, 128], sizes = [8, 128], strides = [1, 1]} : vector<8x512xf32> to vector<8x128xf32>
    %cst_65 = arith.constant 0.000000e+00 : f32
    %198 = vector.broadcast %cst_65 : f32 to vector<8x128xf32>
    %199 = arith.subf %198, %197 : vector<8x128xf32>
    %200 = math.exp %199 : vector<8x128xf32>
    %cst_66 = arith.constant 1.000000e+00 : f32
    %201 = vector.broadcast %cst_66 : f32 to vector<8x128xf32>
    %202 = arith.addf %201, %200 : vector<8x128xf32>
    %cst_67 = arith.constant 1.000000e+00 : f32
    %203 = vector.broadcast %cst_67 : f32 to vector<8x128xf32>
    %204 = arith.divf %203, %202 : vector<8x128xf32>
    %205 = vector.extract_strided_slice %188 {offsets = [0, 256], sizes = [8, 128], strides = [1, 1]} : vector<8x512xf32> to vector<8x128xf32>
    %206 = math.tanh %205 : vector<8x128xf32>
    %207 = vector.extract_strided_slice %188 {offsets = [0, 384], sizes = [8, 128], strides = [1, 1]} : vector<8x512xf32> to vector<8x128xf32>
    %cst_68 = arith.constant 0.000000e+00 : f32
    %208 = vector.broadcast %cst_68 : f32 to vector<8x128xf32>
    %209 = arith.subf %208, %207 : vector<8x128xf32>
    %210 = math.exp %209 : vector<8x128xf32>
    %cst_69 = arith.constant 1.000000e+00 : f32
    %211 = vector.broadcast %cst_69 : f32 to vector<8x128xf32>
    %212 = arith.addf %211, %210 : vector<8x128xf32>
    %cst_70 = arith.constant 1.000000e+00 : f32
    %213 = vector.broadcast %cst_70 : f32 to vector<8x128xf32>
    %214 = arith.divf %213, %212 : vector<8x128xf32>
    %215 = arith.mulf %204, %162 : vector<8x128xf32>
    %216 = arith.mulf %196, %206 : vector<8x128xf32>
    %217 = arith.addf %215, %216 : vector<8x128xf32>
    %218 = math.tanh %217 : vector<8x128xf32>
    %219 = arith.mulf %214, %218 : vector<8x128xf32>
    %220 = vector.broadcast %9 : vector<1x128xf32> to vector<8x128xf32>
    %221 = arith.mulf %219, %220 : vector<8x128xf32>
    %cst_71 = arith.constant dense<0.000000e+00> : vector<8xf32>
    %222 = vector.multi_reduction <add>, %221, %cst_71 [1] : vector<8x128xf32> to vector<8xf32>
    %223 = vector.shape_cast %222 : vector<8xf32> to vector<8x1xf32>
    %224 = arith.addi %10, %c3_i32 : i32
    %225 = arith.index_cast %224 : i32 to index
    %226 = memref.load %arg2[%225] : memref<8xf32, #tpu.memory_space<smem>>
    %227 = vector.broadcast %226 : f32 to vector<8x1xf32>
    %228 = arith.addf %223, %227 : vector<8x1xf32>
    %229 = math.tanh %228 : vector<8x1xf32>
    %230 = math.exp %229 : vector<8x1xf32>
    %231 = arith.addf %176, %230 : vector<8x1xf32>
    %232 = vector.broadcast %230 : vector<8x1xf32> to vector<8x128xf32>
    %233 = arith.mulf %232, %219 : vector<8x128xf32>
    %234 = arith.addf %179, %233 : vector<8x128xf32>
    %c4_i32_72 = arith.constant 4 : i32
    %c0_73 = arith.constant 0 : index
    %c0_74 = arith.constant 0 : index
    %235 = vector.load %arg12[%c0_73, %c0_74] : memref<8x128xf32, #tpu.memory_space<vmem>>, vector<8x128xf32>
    tpu.vector_store %arg12[%c0_73, %c0_74], %219 {strides = array<i32>} : memref<8x128xf32, #tpu.memory_space<vmem>>, vector<8x128xf32>,
    %c0_75 = arith.constant 0 : index
    %c0_76 = arith.constant 0 : index
    %236 = vector.load %arg13[%c0_75, %c0_76] : memref<8x128xf32, #tpu.memory_space<vmem>>, vector<8x128xf32>
    tpu.vector_store %arg13[%c0_75, %c0_76], %217 {strides = array<i32>} : memref<8x128xf32, #tpu.memory_space<vmem>>, vector<8x128xf32>,
    %c0_77 = arith.constant 0 : index
    %c0_78 = arith.constant 0 : index
    %237 = vector.load %arg14[%c0_77, %c0_78] : memref<8x1xf32, #tpu.memory_space<vmem>>, vector<8x1xf32>
    tpu.vector_store %arg14[%c0_77, %c0_78], %231 {strides = array<i32>} : memref<8x1xf32, #tpu.memory_space<vmem>>, vector<8x1xf32>,
    %c0_79 = arith.constant 0 : index
    %c0_80 = arith.constant 0 : index
    %238 = vector.load %arg15[%c0_79, %c0_80] : memref<8x128xf32, #tpu.memory_space<vmem>>, vector<8x128xf32>
    tpu.vector_store %arg15[%c0_79, %c0_80], %234 {strides = array<i32>} : memref<8x128xf32, #tpu.memory_space<vmem>>, vector<8x128xf32>,
    %c1_i32_81 = arith.constant 1 : i32
    %239 = arith.cmpi eq, %arg0, %c1_i32_81 : i32
    %240 = arith.extui %239 : i1 to i32
    %c0_i32_82 = arith.constant 0 : i32
    %241 = arith.cmpi ne, %240, %c0_i32_82 : i32
    scf.if %241 {
      %c0_83 = arith.constant 0 : index
      %c0_84 = arith.constant 0 : index
      %242 = vector.load %arg15[%c0_83, %c0_84] : memref<8x128xf32, #tpu.memory_space<vmem>>, vector<8x128xf32>
      %c0_85 = arith.constant 0 : index
      %c0_86 = arith.constant 0 : index
      %243 = vector.load %arg14[%c0_85, %c0_86] : memref<8x1xf32, #tpu.memory_space<vmem>>, vector<8x1xf32>
      %cst_87 = arith.constant 1.000000e-10 : f32
      %244 = vector.broadcast %cst_87 : f32 to vector<8x1xf32>
      %245 = arith.addf %243, %244 : vector<8x1xf32>
      %246 = vector.broadcast %245 : vector<8x1xf32> to vector<8x128xf32>
      %247 = arith.divf %242, %246 : vector<8x128xf32>
      %248 = arith.truncf %247 : vector<8x128xf32> to vector<8x128xbf16>
      %c0_88 = arith.constant 0 : index
      %c0_89 = arith.constant 0 : index
      %249 = vector.load %arg7[%c0_88, %c0_89] : memref<128x128xbf16, #tpu.memory_space<vmem>>, vector<128x128xbf16>
      %cst_90 = arith.constant dense<0.000000e+00> : vector<8x128xf32>
      %250 = tpu.matmul %248, %249, %cst_90 {dimension_numbers = #tpu.dot_dimension_numbers<[1], [0], [0], [1], [0, 0, 1, 1], [], []>} : vector<8x128xbf16>, vector<128x128xbf16>, vector<8x128xf32> -> vector<8x128xf32>
      %c0_91 = arith.constant 0 : index
      %c0_92 = arith.constant 0 : index
      %251 = vector.load %arg8[%c0_91, %c0_92] : memref<1x128xf32, #tpu.memory_space<vmem>>, vector<1x128xf32>
      %252 = vector.broadcast %251 : vector<1x128xf32> to vector<8x128xf32>
      %253 = arith.addf %250, %252 : vector<8x128xf32>
      %cst_93 = arith.constant 0.000000e+00 : f32
      %254 = vector.broadcast %cst_93 : f32 to vector<8x128xf32>
      %255 = arith.maximumf %253, %254 : vector<8x128xf32>
      %256 = arith.truncf %255 : vector<8x128xf32> to vector<8x128xbf16>
      %c0_94 = arith.constant 0 : index
      %c0_95 = arith.constant 0 : index
      %257 = vector.load %arg9[%c0_94, %c0_95] : memref<128x10xbf16, #tpu.memory_space<vmem>>, vector<128x10xbf16>
      %cst_96 = arith.constant dense<0.000000e+00> : vector<8x10xf32>
      %258 = tpu.matmul %256, %257, %cst_96 {dimension_numbers = #tpu.dot_dimension_numbers<[1], [0], [0], [1], [0, 0, 1, 1], [], []>} : vector<8x128xbf16>, vector<128x10xbf16>, vector<8x10xf32> -> vector<8x10xf32>
      %c0_97 = arith.constant 0 : index
      %c0_98 = arith.constant 0 : index
      %259 = vector.load %arg10[%c0_97, %c0_98] : memref<1x10xf32, #tpu.memory_space<vmem>>, vector<1x10xf32>
      %260 = vector.broadcast %259 : vector<1x10xf32> to vector<8x10xf32>
      %261 = arith.addf %258, %260 : vector<8x10xf32>
      %c0_99 = arith.constant 0 : index
      %c0_100 = arith.constant 0 : index
      %262 = vector.load %arg11[%c0_99, %c0_100] : memref<8x10xf32, #tpu.memory_space<vmem>>, vector<8x10xf32>
      tpu.vector_store %arg11[%c0_99, %c0_100], %261 {strides = array<i32>} : memref<8x10xf32, #tpu.memory_space<vmem>>, vector<8x10xf32>,
    } else {
    }
    return
  }
  func.func @transform_0(%arg0: i32) -> (i32, i32) {
    %c0_i32 = arith.constant 0 : i32
    %c0_i32_0 = arith.constant 0 : i32
    return %arg0, %c0_i32 : i32, i32
  }
  func.func @transform_1(%arg0: i32) -> i32 {
    %c0_i32 = arith.constant 0 : i32
    %c0_i32_0 = arith.constant 0 : i32
    return %c0_i32 : i32
  }
  func.func @transform_2(%arg0: i32) -> (i32, i32) {
    %c0_i32 = arith.constant 0 : i32
    %c0_i32_0 = arith.constant 0 : i32
    %c0_i32_1 = arith.constant 0 : i32
    return %c0_i32, %c0_i32_0 : i32, i32
  }
  func.func @transform_3(%arg0: i32) -> (i32, i32) {
    %c0_i32 = arith.constant 0 : i32
    %c0_i32_0 = arith.constant 0 : i32
    %c0_i32_1 = arith.constant 0 : i32
    return %c0_i32, %c0_i32_0 : i32, i32
  }
  func.func @transform_4(%arg0: i32) -> (i32, i32) {
    %c0_i32 = arith.constant 0 : i32
    %c0_i32_0 = arith.constant 0 : i32
    %c0_i32_1 = arith.constant 0 : i32
    return %c0_i32, %c0_i32_0 : i32, i32
  }
  func.func @transform_5(%arg0: i32) -> (i32, i32) {
    %c0_i32 = arith.constant 0 : i32
    %c0_i32_0 = arith.constant 0 : i32
    %c0_i32_1 = arith.constant 0 : i32
    return %c0_i32, %c0_i32_0 : i32, i32
  }
  func.func @transform_6(%arg0: i32) -> (i32, i32) {
    %c0_i32 = arith.constant 0 : i32
    %c0_i32_0 = arith.constant 0 : i32
    %c0_i32_1 = arith.constant 0 : i32
    return %c0_i32, %c0_i32_0 : i32, i32
  }
  func.func @transform_7(%arg0: i32) -> (i32, i32) {
    %c0_i32 = arith.constant 0 : i32
    %c0_i32_0 = arith.constant 0 : i32
    %c0_i32_1 = arith.constant 0 : i32
    return %c0_i32, %c0_i32_0 : i32, i32
  }
  func.func @transform_8(%arg0: i32) -> (i32, i32) {
    %c0_i32 = arith.constant 0 : i32
    %c0_i32_0 = arith.constant 0 : i32
    %c0_i32_1 = arith.constant 0 : i32
    return %c0_i32, %c0_i32_0 : i32, i32
  }
  func.func @transform_9(%arg0: i32) -> (i32, i32) {
    %c0_i32 = arith.constant 0 : i32
    %c0_i32_0 = arith.constant 0 : i32
    %c0_i32_1 = arith.constant 0 : i32
    return %c0_i32, %c0_i32_0 : i32, i32
  }
  func.func @transform_10(%arg0: i32) -> (i32, i32) {
    %c0_i32 = arith.constant 0 : i32
    %c0_i32_0 = arith.constant 0 : i32
    %c0_i32_1 = arith.constant 0 : i32
    return %c0_i32, %c0_i32_0 : i32, i32
  }
}

</mosaic_0001>

<llo_original>
// kernel: tpu_custom_call.1
$region0: #{tpu_custom_call.1}
  #allocation0 [shape = 'u32[]', space=smem, size = 0x4, offset = 0x4, fixed_abs, tag = 'smem constant byte address 0x4 - core index']
  #allocation1 [shape = 'u32[72,128]{1,0:T(1,128)}', space=vmem, size = 0x9000, scoped, tag = 'internal scratch']
  #allocation2 [shape = 'f32[8,128]{1,0:T(8,128)}', space=vmem, size = 0x1000, scoped, tag = 'scratch operand']
  #allocation3 [shape = 'f32[8,128]{1,0:T(8,128)}', space=vmem, size = 0x1000, scoped, tag = 'scratch operand']
  #allocation4 [shape = 'f32[8,1]{1,0:T(8,128)}', space=vmem, size = 0x1000, scoped, tag = 'scratch operand']
  #allocation5 [shape = 'f32[8,128]{1,0:T(8,128)}', space=vmem, size = 0x1000, scoped, tag = 'scratch operand']
  #allocation6 [shape = 'f32[32,512]{1,0:T(8,128)}', space=vmem, size = 0x10000, scoped, tag = 'scratch operand']
  %s0 = inlined_call_operand.vmem [shape: bf16[64,32], index: 0, kind: input, shape index: {}]
  %s1 = inlined_call_operand.vmem [shape: f32[8], index: 1, kind: input, shape index: {}]
  %s2 = inlined_call_operand.vmem [shape: bf16[32,512], index: 2, kind: input, shape index: {}]
  %s3 = inlined_call_operand.hbm [shape: bf16[128,512], index: 3, kind: input, shape index: {}]
  %s4 = inlined_call_operand.vmem [shape: f32[1,512], index: 4, kind: input, shape index: {}]
  %s5 = inlined_call_operand.vmem [shape: f32[1,128], index: 5, kind: input, shape index: {}]
  %s6 = inlined_call_operand.hbm [shape: bf16[128,128], index: 6, kind: input, shape index: {}]
  %s7 = inlined_call_operand.vmem [shape: f32[1,128], index: 7, kind: input, shape index: {}]
  %s8 = inlined_call_operand.vmem [shape: bf16[128,10], index: 8, kind: input, shape index: {}]
  %s9 = inlined_call_operand.vmem [shape: f32[1,10], index: 9, kind: input, shape index: {}]
  %s10 = inlined_call_operand.hbm [shape: f32[8,10], index: 10, kind: output, shape index: {}]
  %s11 = sld [smem:[#allocation0]]
  $region93: #{tpu_custom_call.1} parent=0
    _
  %s13 = ssub.s32 1, %s11
  %s14 = scalar_select 0, %s13, %s11
  $region1: #{tpu_custom_call.1} parent=0
    #allocation7 [shape = 'u8[512]{0}', space=smem, size = 0x200, scoped, tag = 'input window, operand 1, single buffered']
    #allocation8 [shape = 's32[2]{0}', space=sflag, size = 0x8, scoped, tag = 'scoped memory for tpu_custom_call.1']
    #allocation9 [shape = 's32[2]{0}', space=sflag, size = 0x8, scoped, tag = 'scoped memory for tpu_custom_call.1']
    #allocation10 [shape = 's32[2]{0}', space=sflag, size = 0x8, scoped, tag = 'scoped memory for tpu_custom_call.1']
    #allocation11 [shape = 'u8[131072]{0}', space=vmem, size = 0x20000, scoped, tag = 'input window, operand 3, single buffered']
    #allocation12 [shape = 'u8[32768]{0}', space=vmem, size = 0x8000, scoped, tag = 'input window, operand 6, single buffered']
    #allocation13 [shape = 's32[1]{0}', space=sflag, size = 0x4, scoped, tag = 'scoped memory for tpu_custom_call.1']
    #allocation14 [shape = 'u8[4096]{0}', space=vmem, size = 0x1000, scoped, tag = 'output window, operand 0, single buffered']
    %15 = vsyncpa [#allocation10], 0
    %16 = vsyncpa [#allocation8], 0
    %17 = vsyncpa [#allocation13], 0
    %18 = vsyncpa [#allocation9], 0
    loop: start=0, step=1, limit=4
    $region2: #{tpu_custom_call.1} parent=1 // loop_pre_header
      _
    $region3: #{tpu_custom_call.1} parent=1 // loop_header
      %s20 = sphi 0, %s24
      %p21 = scmp.ge.s32.totalorder %s20, 4
      %s30 = sphi 0, %s32
      %s33 = sphi 0, %s30
      %s34 = sphi 0, %s33
      %s50 = sphi 0, %s34
      %s54 = sphi 0, %s54
      %s56 = sphi 0, %s54
      %s57 = sphi 0, %s56
      %s71 = sphi 0, %s57
      %s75 = sphi 0, %s75
      %s77 = sphi 0, %s75
      %s78 = sphi 0, %s77
      %s92 = sphi 0, %s78
      %s96 = sphi 0, %s96
      %s98 = sphi 0, %s96
      %s99 = sphi 0, %s98
      %s113 = sphi 0, %s99
      %s117 = sphi 0, %s117
      %s119 = sphi 0, %s117
      %s120 = sphi 0, %s119
      %s134 = sphi 0, %s120
      %s138 = sphi 0, %s138
      %s140 = sphi 0, %s138
      %s141 = sphi 0, %s140
      %s155 = sphi 0, %s141
      %s159 = sphi 0, %s159
      %s161 = sphi 0, %s159
      %s162 = sphi 0, %s161
      %s176 = sphi 0, %s162
      %s180 = sphi 0, %s180
      %s182 = sphi 0, %s180
      %s183 = sphi 0, %s182
      %s197 = sphi 0, %s183
      %s201 = sphi 0, %s201
      %s203 = sphi 0, %s201
      %s204 = sphi 0, %s203
      %s218 = sphi 0, %s204
      %s222 = sphi 0, %s222
      %s224 = sphi 0, %s222
      %s225 = sphi 0, %s224
      %s239 = sphi 0, %s225
      %s243 = sphi 0, %s243
      %s245 = sphi 0, %s243
      %s246 = sphi 0, %s245
      %s260 = sphi 0, %s246
    $region4: #{tpu_custom_call.1} parent=1 // loop_header_branch
      %23 = sbr.rel (%p21) target = $region8
    $region5: #{tpu_custom_call.1} parent=1 // loop_body
      %s25 = ssub.s32 %s20, 1
      %s26 = ssub.s32 %s20, 2
      %s27 = sadd.s32 %s20, 1
      %s28 = ssub.s32 %s20, %s27
      %p29 = scmp.eq.s32.totalorder %s28, 0
      %s31 = sadd.s32 %s30, 1
      %s32 = scalar_select %p29, %s30, %s31
      %p35 = pneg %p29
      %p36 = scmp.eq.s32.totalorder %s20, 1
      %p37 = por %p35, %p36
      %p38 = scmp.ne.s32.totalorder %s30, %s33
      %p39 = scmp.eq.s32.totalorder %s20, 0
      %p40 = por %p38, %p39
      %p41 = scmp.ne.s32.totalorder %s30, %s33
      %p42 = scmp.eq.s32.totalorder %s25, 1
      %p43 = por %p41, %p42
      %p44 = scmp.ne.s32.totalorder %s33, %s34
      %p45 = scmp.eq.s32.totalorder %s25, 0
      %p46 = por %p44, %p45
      %p47 = scmp.ne.s32.totalorder %s33, %s34
      %p48 = scmp.eq.s32.totalorder %s26, 1
      %p49 = por %p47, %p48
      %p51 = scmp.ne.s32.totalorder %s34, %s50
      %p52 = scmp.eq.s32.totalorder %s26, 0
      %p53 = por %p51, %p52
      %s55 = sadd.s32 %s54, 1
      %p58 = scmp.eq.s32.totalorder %s20, 1
      %p59 = scmp.ne.s32.totalorder %s54, %s56
      %p60 = scmp.eq.s32.totalorder %s20, 0
      %p61 = por %p59, %p60
      %p62 = scmp.ne.s32.totalorder %s54, %s56
      %p63 = scmp.eq.s32.totalorder %s25, 1
      %p64 = por %p62, %p63
      %p65 = scmp.ne.s32.totalorder %s56, %s57
      %p66 = scmp.eq.s32.totalorder %s25, 0
      %p67 = por %p65, %p66
      %p68 = scmp.ne.s32.totalorder %s56, %s57
      %p69 = scmp.eq.s32.totalorder %s26, 1
      %p70 = por %p68, %p69
      %p72 = scmp.ne.s32.totalorder %s57, %s71
      %p73 = scmp.eq.s32.totalorder %s26, 0
      %p74 = por %p72, %p73
      %s76 = sadd.s32 %s75, 1
      %p79 = scmp.eq.s32.totalorder %s20, 1
      %p80 = scmp.ne.s32.totalorder %s75, %s77
      %p81 = scmp.eq.s32.totalorder %s20, 0
      %p82 = por %p80, %p81
      %p83 = scmp.ne.s32.totalorder %s75, %s77
      %p84 = scmp.eq.s32.totalorder %s25, 1
      %p85 = por %p83, %p84
      %p86 = scmp.ne.s32.totalorder %s77, %s78
      %p87 = scmp.eq.s32.totalorder %s25, 0
      %p88 = por %p86, %p87
      %p89 = scmp.ne.s32.totalorder %s77, %s78
      %p90 = scmp.eq.s32.totalorder %s26, 1
      %p91 = por %p89, %p90
      %p93 = scmp.ne.s32.totalorder %s78, %s92
      %p94 = scmp.eq.s32.totalorder %s26, 0
      %p95 = por %p93, %p94
      %s97 = sadd.s32 %s96, 1
      %p100 = scmp.eq.s32.totalorder %s20, 1
      %p101 = scmp.ne.s32.totalorder %s96, %s98
      %p102 = scmp.eq.s32.totalorder %s20, 0
      %p103 = por %p101, %p102
      %p104 = scmp.ne.s32.totalorder %s96, %s98
      %p105 = scmp.eq.s32.totalorder %s25, 1
      %p106 = por %p104, %p105
      %p107 = scmp.ne.s32.totalorder %s98, %s99
      %p108 = scmp.eq.s32.totalorder %s25, 0
      %p109 = por %p107, %p108
      %p110 = scmp.ne.s32.totalorder %s98, %s99
      %p111 = scmp.eq.s32.totalorder %s26, 1
      %p112 = por %p110, %p111
      %p114 = scmp.ne.s32.totalorder %s99, %s113
      %p115 = scmp.eq.s32.totalorder %s26, 0
      %p116 = por %p114, %p115
      %s118 = sadd.s32 %s117, 1
      %p121 = scmp.eq.s32.totalorder %s20, 1
      %p122 = scmp.ne.s32.totalorder %s117, %s119
      %p123 = scmp.eq.s32.totalorder %s20, 0
      %p124 = por %p122, %p123
      %p125 = scmp.ne.s32.totalorder %s117, %s119
      %p126 = scmp.eq.s32.totalorder %s25, 1
      %p127 = por %p125, %p126
      %p128 = scmp.ne.s32.totalorder %s119, %s120
      %p129 = scmp.eq.s32.totalorder %s25, 0
      %p130 = por %p128, %p129
      %p131 = scmp.ne.s32.totalorder %s119, %s120
      %p132 = scmp.eq.s32.totalorder %s26, 1
      %p133 = por %p131, %p132
      %p135 = scmp.ne.s32.totalorder %s120, %s134
      %p136 = scmp.eq.s32.totalorder %s26, 0
      %p137 = por %p135, %p136
      %s139 = sadd.s32 %s138, 1
      %p142 = scmp.eq.s32.totalorder %s20, 1
      %p143 = scmp.ne.s32.totalorder %s138, %s140
      %p144 = scmp.eq.s32.totalorder %s20, 0
      %p145 = por %p143, %p144
      %p146 = scmp.ne.s32.totalorder %s138, %s140
      %p147 = scmp.eq.s32.totalorder %s25, 1
      %p148 = por %p146, %p147
      %p149 = scmp.ne.s32.totalorder %s140, %s141
      %p150 = scmp.eq.s32.totalorder %s25, 0
      %p151 = por %p149, %p150
      %p152 = scmp.ne.s32.totalorder %s140, %s141
      %p153 = scmp.eq.s32.totalorder %s26, 1
      %p154 = por %p152, %p153
      %p156 = scmp.ne.s32.totalorder %s141, %s155
      %p157 = scmp.eq.s32.totalorder %s26, 0
      %p158 = por %p156, %p157
      %s160 = sadd.s32 %s159, 1
      %p163 = scmp.eq.s32.totalorder %s20, 1
      %p164 = scmp.ne.s32.totalorder %s159, %s161
      %p165 = scmp.eq.s32.totalorder %s20, 0
      %p166 = por %p164, %p165
      %p167 = scmp.ne.s32.totalorder %s159, %s161
      %p168 = scmp.eq.s32.totalorder %s25, 1
      %p169 = por %p167, %p168
      %p170 = scmp.ne.s32.totalorder %s161, %s162
      %p171 = scmp.eq.s32.totalorder %s25, 0
      %p172 = por %p170, %p171
      %p173 = scmp.ne.s32.totalorder %s161, %s162
      %p174 = scmp.eq.s32.totalorder %s26, 1
      %p175 = por %p173, %p174
      %p177 = scmp.ne.s32.totalorder %s162, %s176
      %p178 = scmp.eq.s32.totalorder %s26, 0
      %p179 = por %p177, %p178
      %s181 = sadd.s32 %s180, 1
      %p184 = scmp.eq.s32.totalorder %s20, 1
      %p185 = scmp.ne.s32.totalorder %s180, %s182
      %p186 = scmp.eq.s32.totalorder %s20, 0
      %p187 = por %p185, %p186
      %p188 = scmp.ne.s32.totalorder %s180, %s182
      %p189 = scmp.eq.s32.totalorder %s25, 1
      %p190 = por %p188, %p189
      %p191 = scmp.ne.s32.totalorder %s182, %s183
      %p192 = scmp.eq.s32.totalorder %s25, 0
      %p193 = por %p191, %p192
      %p194 = scmp.ne.s32.totalorder %s182, %s183
      %p195 = scmp.eq.s32.totalorder %s26, 1
      %p196 = por %p194, %p195
      %p198 = scmp.ne.s32.totalorder %s183, %s197
      %p199 = scmp.eq.s32.totalorder %s26, 0
      %p200 = por %p198, %p199
      %s202 = sadd.s32 %s201, 1
      %p205 = scmp.eq.s32.totalorder %s20, 1
      %p206 = scmp.ne.s32.totalorder %s201, %s203
      %p207 = scmp.eq.s32.totalorder %s20, 0
      %p208 = por %p206, %p207
      %p209 = scmp.ne.s32.totalorder %s201, %s203
      %p210 = scmp.eq.s32.totalorder %s25, 1
      %p211 = por %p209, %p210
      %p212 = scmp.ne.s32.totalorder %s203, %s204
      %p213 = scmp.eq.s32.totalorder %s25, 0
      %p214 = por %p212, %p213
      %p215 = scmp.ne.s32.totalorder %s203, %s204
      %p216 = scmp.eq.s32.totalorder %s26, 1
      %p217 = por %p215, %p216
      %p219 = scmp.ne.s32.totalorder %s204, %s218
      %p220 = scmp.eq.s32.totalorder %s26, 0
      %p221 = por %p219, %p220
      %s223 = sadd.s32 %s222, 1
      %p226 = scmp.eq.s32.totalorder %s20, 1
      %p227 = scmp.ne.s32.totalorder %s222, %s224
      %p228 = scmp.eq.s32.totalorder %s20, 0
      %p229 = por %p227, %p228
      %p230 = scmp.ne.s32.totalorder %s222, %s224
      %p231 = scmp.eq.s32.totalorder %s25, 1
      %p232 = por %p230, %p231
      %p233 = scmp.ne.s32.totalorder %s224, %s225
      %p234 = scmp.eq.s32.totalorder %s25, 0
      %p235 = por %p233, %p234
      %p236 = scmp.ne.s32.totalorder %s224, %s225
      %p237 = scmp.eq.s32.totalorder %s26, 1
      %p238 = por %p236, %p237
      %p240 = scmp.ne.s32.totalorder %s225, %s239
      %p241 = scmp.eq.s32.totalorder %s26, 0
      %p242 = por %p240, %p241
      %s244 = sadd.s32 %s243, 1
      %p247 = scmp.eq.s32.totalorder %s20, 1
      %p248 = scmp.ne.s32.totalorder %s243, %s245
      %p249 = scmp.eq.s32.totalorder %s20, 0
      %p250 = por %p248, %p249
      %p251 = scmp.ne.s32.totalorder %s243, %s245
      %p252 = scmp.eq.s32.totalorder %s25, 1
      %p253 = por %p251, %p252
      %p254 = scmp.ne.s32.totalorder %s245, %s246
      %p255 = scmp.eq.s32.totalorder %s25, 0
      %p256 = por %p254, %p255
      %p257 = scmp.ne.s32.totalorder %s245, %s246
      %p258 = scmp.eq.s32.totalorder %s26, 1
      %p259 = por %p257, %p258
      %p261 = scmp.ne.s32.totalorder %s246, %s260
      %p262 = scmp.eq.s32.totalorder %s26, 0
      %p263 = por %p261, %p262
      %p264 = scmp.le.s32.totalorder 1, %s20
      %p265 = scmp.lt.s32.totalorder %s20, 3
      %p266 = pnand %p264, %p265
      %p267 = pneg %p266
      // Predicated region
      $region9: #{tpu_custom_call.1} parent=5 // pred_check
        _
      $region10: #{tpu_custom_call.1} parent=5 // pred_check_branch
        %269 = sbr.rel (%p266) target = $region12
      $region11: #{tpu_custom_call.1} parent=5 // pred_region
        %s270 = ssub.s32 %s20, 1
        // Predicated region
        $region13: #{tpu_custom_call.1} parent=11 // pred_check
          %p271 = pneg %p67
        $region14: #{tpu_custom_call.1} parent=11 // pred_check_branch
          %273 = sbr.rel (%p271) target = $region16
        $region15: #{tpu_custom_call.1} parent=11 // pred_region
          %275 = vsyncadd [#allocation10], 0
          %s277 = sshll.u32 %s1, 4
          %s278 = int_to_ptr.vmem [resolvable:$true] %s277
          %280 = dma.vmem_to_smem %s278, 16, [#allocation7], [#allocation10]
        $region16: #{tpu_custom_call.1} parent=11 // pred_fallthru
          _
        // Predicated region
        $region17: #{tpu_custom_call.1} parent=11 // pred_check
          %p281 = pneg %p88
        $region18: #{tpu_custom_call.1} parent=11 // pred_check_branch
          %283 = sbr.rel (%p281) target = $region20
        $region19: #{tpu_custom_call.1} parent=11 // pred_region
          _
        $region20: #{tpu_custom_call.1} parent=11 // pred_fallthru
          _
        // Predicated region
        $region21: #{tpu_custom_call.1} parent=11 // pred_check
          %p284 = pneg %p109
        $region22: #{tpu_custom_call.1} parent=11 // pred_check_branch
          %286 = sbr.rel (%p284) target = $region24
        $region23: #{tpu_custom_call.1} parent=11 // pred_region
          %288 = vsyncadd [#allocation8], 0
          %s289 = sshll.u32 %s3, 4
          %s290 = int_to_ptr.hbm [resolvable:$true] %s289
          %s291 = sshll.u32 [#allocation11], 4
          %s292 = int_to_ptr.vmem [resolvable:$true] %s291
          %297 = dma.hbm_to_vmem [thread:$0]  %s290, 4096, %s292, [#allocation8], 256, 256, 16
        $region24: #{tpu_custom_call.1} parent=11 // pred_fallthru
          _
        // Predicated region
        $region25: #{tpu_custom_call.1} parent=11 // pred_check
          %p298 = pneg %p130
        $region26: #{tpu_custom_call.1} parent=11 // pred_check_branch
          %300 = sbr.rel (%p298) target = $region28
        $region27: #{tpu_custom_call.1} parent=11 // pred_region
          _
        $region28: #{tpu_custom_call.1} parent=11 // pred_fallthru
          _
        // Predicated region
        $region29: #{tpu_custom_call.1} parent=11 // pred_check
          %p301 = pneg %p151
        $region30: #{tpu_custom_call.1} parent=11 // pred_check_branch
          %303 = sbr.rel (%p301) target = $region32
        $region31: #{tpu_custom_call.1} parent=11 // pred_region
          _
        $region32: #{tpu_custom_call.1} parent=11 // pred_fallthru
          _
        // Predicated region
        $region33: #{tpu_custom_call.1} parent=11 // pred_check
          %p304 = pneg %p172
        $region34: #{tpu_custom_call.1} parent=11 // pred_check_branch
          %306 = sbr.rel (%p304) target = $region36
        $region35: #{tpu_custom_call.1} parent=11 // pred_region
          %308 = vsyncadd [#allocation13], 0
          %s309 = sshll.u32 %s6, 4
          %s310 = int_to_ptr.hbm [resolvable:$true] %s309
          %s311 = sshll.u32 [#allocation12], 4
          %s312 = int_to_ptr.vmem [resolvable:$true] %s311
          %317 = dma.hbm_to_vmem [thread:$0]  %s310, 1024, %s312, [#allocation13], 64, 64, 4
        $region36: #{tpu_custom_call.1} parent=11 // pred_fallthru
          _
        // Predicated region
        $region37: #{tpu_custom_call.1} parent=11 // pred_check
          %p318 = pneg %p193
        $region38: #{tpu_custom_call.1} parent=11 // pred_check_branch
          %320 = sbr.rel (%p318) target = $region40
        $region39: #{tpu_custom_call.1} parent=11 // pred_region
          _
        $region40: #{tpu_custom_call.1} parent=11 // pred_fallthru
          _
        // Predicated region
        $region41: #{tpu_custom_call.1} parent=11 // pred_check
          %p321 = pneg %p214
        $region42: #{tpu_custom_call.1} parent=11 // pred_check_branch
          %323 = sbr.rel (%p321) target = $region44
        $region43: #{tpu_custom_call.1} parent=11 // pred_region
          _
        $region44: #{tpu_custom_call.1} parent=11 // pred_fallthru
          _
        // Predicated region
        $region45: #{tpu_custom_call.1} parent=11 // pred_check
          %p324 = pneg %p235
        $region46: #{tpu_custom_call.1} parent=11 // pred_check_branch
          %326 = sbr.rel (%p324) target = $region48
        $region47: #{tpu_custom_call.1} parent=11 // pred_region
          _
        $region48: #{tpu_custom_call.1} parent=11 // pred_fallthru
          _
      $region12: #{tpu_custom_call.1} parent=5 // pred_fallthru
        _
      %p327 = scmp.lt.s32.totalorder %s20, 2
      // Predicated region
      $region49: #{tpu_custom_call.1} parent=5 // pred_check
        %p328 = pneg %p327
      $region50: #{tpu_custom_call.1} parent=5 // pred_check_branch
        %330 = sbr.rel (%p328) target = $region52
      $region51: #{tpu_custom_call.1} parent=5 // pred_region
        // Predicated region
        $region53: #{tpu_custom_call.1} parent=51 // pred_check
          %p331 = pneg %p40
        $region54: #{tpu_custom_call.1} parent=51 // pred_check_branch
          %333 = sbr.rel (%p331) target = $region56
        $region55: #{tpu_custom_call.1} parent=51 // pred_region
          %s334 = smul.u32 4, %s20
          %p335 = scmp.lt.s32.totalorder %s334, 7
          %s336 = scalar_select %p335, %s334, 7
          %s337 = smul.addr %s336, 4
          %s338 = scalar_lea.vmem %s0, %s337
          %s339 = smul.u32 4, %s20
        $region56: #{tpu_custom_call.1} parent=51 // pred_fallthru
          _
      $region52: #{tpu_custom_call.1} parent=5 // pred_fallthru
        _
      %p340 = scmp.le.s32.totalorder 1, %s20
      %p341 = scmp.lt.s32.totalorder %s20, 3
      %p342 = pnand %p340, %p341
      %p343 = pneg %p342
      // Predicated region
      $region57: #{tpu_custom_call.1} parent=5 // pred_check
        _
      $region58: #{tpu_custom_call.1} parent=5 // pred_check_branch
        %345 = sbr.rel (%p342) target = $region60
      $region59: #{tpu_custom_call.1} parent=5 // pred_region
        %s346 = ssub.s32 %s20, 1
        // Predicated region
        $region61: #{tpu_custom_call.1} parent=59 // pred_check
          %p347 = pneg %p67
        $region62: #{tpu_custom_call.1} parent=59 // pred_check_branch
          %349 = sbr.rel (%p347) target = $region64
        $region63: #{tpu_custom_call.1} parent=59 // pred_region
          %351 = dma.done [#allocation10], 16
        $region64: #{tpu_custom_call.1} parent=59 // pred_fallthru
          _
        // Predicated region
        $region65: #{tpu_custom_call.1} parent=59 // pred_check
          %p352 = pneg %p109
        $region66: #{tpu_custom_call.1} parent=59 // pred_check_branch
          %354 = sbr.rel (%p352) target = $region68
        $region67: #{tpu_custom_call.1} parent=59 // pred_region
          %356 = dma.done [#allocation8], 4096
        $region68: #{tpu_custom_call.1} parent=59 // pred_fallthru
          _
        // Predicated region
        $region69: #{tpu_custom_call.1} parent=59 // pred_check
          %p357 = pneg %p172
        $region70: #{tpu_custom_call.1} parent=59 // pred_check_branch
          %359 = sbr.rel (%p357) target = $region72
        $region71: #{tpu_custom_call.1} parent=59 // pred_region
          %361 = dma.done [#allocation13], 1024
        $region72: #{tpu_custom_call.1} parent=59 // pred_fallthru
          _
        %362 = sfence
        %s363 = smul.u32 4, %s25
        %p364 = scmp.lt.s32.totalorder %s363, 7
        %s365 = scalar_select %p364, %s363, 7
        %s366 = smul.addr %s365, 4
        %s367 = scalar_lea.vmem %s0, %s366
        %p368 = pneg %p46
        %p369 = pneg %p43
        %p370 = pneg %p67
        %p371 = pneg %p64
        %p372 = pneg %p88
        %p373 = pneg %p85
        %p374 = pneg %p109
        %p375 = pneg %p106
        %p376 = pneg %p130
        %p377 = pneg %p127
        %p378 = pneg %p151
        %p379 = pneg %p148
        %p380 = pneg %p172
        %p381 = pneg %p169
        %p382 = pneg %p193
        %p383 = pneg %p190
        %p384 = pneg %p214
        %p385 = pneg %p211
        %p386 = pneg %p235
        %p387 = pneg %p232
        %p388 = pneg %p256
        %p389 = pneg %p253
        %s390 = smul.u32 4, %s25
        %p391 = scmp.lt.s32.totalorder %s390, 7
        %s392 = scalar_select %p391, %s390, 7
        %s393 = smul.addr %s392, 4
        %s394 = scalar_lea.vmem %s0, %s393
        %s395 = smul.u32 4, %s25
        %p397 = scmp.eq.s32.totalorder %s25, 0
        // Predicated region
        $region73: #{tpu_custom_call.1} parent=59 // pred_check
          %p398 = pneg %p397
        $region74: #{tpu_custom_call.1} parent=59 // pred_check_branch
          %400 = sbr.rel (%p398) target = $region76
        $region75: #{tpu_custom_call.1} parent=59 // pred_region
          %401 = vst [vmem:[#allocation2] sm:$0xff] 0.0
          %402 = vst [vmem:[#allocation3] sm:$0xff] 0.0
          %vm403 = vcmask 7168
          %404 = vst.msk [vmem:[#allocation4] sm:$0xff] %vm403, 0.0
          %405 = vst [vmem:[#allocation5] sm:$0xff] 0.0
        $region76: #{tpu_custom_call.1} parent=59 // pred_fallthru
          _
        %v406 = vld [vmem:[%s394] sm:$0xf]
        %v407 = vld [vmem:[%s394 + $0x4] sm:$0xf]
        %v408 = vld [vmem:[%s394 + $0x8] sm:$0xf]
        %v409 = vld [vmem:[%s394 + $0xc] sm:$0xf]
        %v410 = vld [vmem:[%s2] sm:$0xff]
        %v411 = vld [vmem:[%s2 + $0x8] sm:$0xff]
        %v412 = vld [vmem:[%s2 + $0x10] sm:$0xff]
        %v413 = vld [vmem:[%s2 + $0x18] sm:$0xff]
        %v414 = vld [vmem:[%s2 + $0x20] sm:$0xff]
        %v415 = vld [vmem:[%s2 + $0x28] sm:$0xff]
        %v416 = vld [vmem:[%s2 + $0x30] sm:$0xff]
        %v417 = vld [vmem:[%s2 + $0x38] sm:$0xff]
        %v422 = vunpack.c.l.b16 %v406
        %v423 = vunpack.c.l.b16 %v407
        %v424 = vunpack.c.l.b16 %v408
        %v425 = vunpack.c.l.b16 %v409
        %v426 = vpack.c.b16 %v423, %v422
        %v427 = vpack.c.b16 %v425, %v424
        %v436 = vunpack.c.l.b16 %v410
        %v437 = vunpack.c.h.b16 %v410
        %v438 = vunpack.c.l.b16 %v411
        %v439 = vunpack.c.h.b16 %v411
        %v440 = vunpack.c.l.b16 %v412
        %v441 = vunpack.c.h.b16 %v412
        %v442 = vunpack.c.l.b16 %v413
        %v443 = vunpack.c.h.b16 %v413
        %v444 = vunpack.c.l.b16 %v414
        %v445 = vunpack.c.h.b16 %v414
        %v446 = vunpack.c.l.b16 %v415
        %v447 = vunpack.c.h.b16 %v415
        %v448 = vunpack.c.l.b16 %v416
        %v449 = vunpack.c.h.b16 %v416
        %v450 = vunpack.c.l.b16 %v417
        %v451 = vunpack.c.h.b16 %v417
        %v452 = vpack.c.b16 %v440, %v436
        %v453 = vpack.c.b16 %v441, %v437
        %v454 = vpack.c.b16 %v442, %v438
        %v455 = vpack.c.b16 %v443, %v439
        %v456 = vpack.c.b16 %v448, %v444
        %v457 = vpack.c.b16 %v449, %v445
        %v458 = vpack.c.b16 %v450, %v446
        %v459 = vpack.c.b16 %v451, %v447
        %vm468 = vcmask 261120
        %v470 = vsel %vm468, %v426, 0
        %v473 = vsel %vm468, %v427, 0
        %475 = vmatpush.bf16.msra.mxu0 0
        %476 = vmatpush.bf16.msra.mxu0 0
        %477 = vmatpush.bf16.msra.mxu0 0
        %478 = vmatpush.bf16.msra.mxu0 0
        %479 = vmatpush.bf16.msra.mxu0 0
        %480 = vmatpush.bf16.msra.mxu0 0
        %481 = vmatpush.bf16.msra.mxu0 %v456
        %482 = vmatpush.bf16.msra.mxu0 %v452
        %483 = vmatmul.bf16.gmra.mxu0 %v470
        %v484 = vpop.f32.mrf.mxu0
        %v485 = vadd.f32 0.0, %v484
        %v486 = vpop.f32.mrf.mxu0
        %v487 = vadd.f32 0.0, %v486
        %488 = vmatmul.bf16.gmra.mxu0 %v473
        %v489 = vpop.f32.mrf.mxu0
        %v490 = vadd.f32 0.0, %v489
        %v491 = vpop.f32.mrf.mxu0
        %v492 = vadd.f32 0.0, %v491
        %493 = vdwg.mxu0
        %494 = vmatpush.bf16.msra.mxu0 0
        %495 = vmatpush.bf16.msra.mxu0 0
        %496 = vmatpush.bf16.msra.mxu0 0
        %497 = vmatpush.bf16.msra.mxu0 0
        %498 = vmatpush.bf16.msra.mxu0 0
        %499 = vmatpush.bf16.msra.mxu0 0
        %500 = vmatpush.bf16.msra.mxu0 %v457
        %501 = vmatpush.bf16.msra.mxu0 %v453
        %502 = vmatmul.bf16.gmra.mxu0 %v470
        %v503 = vpop.f32.mrf.mxu0
        %v504 = vadd.f32 0.0, %v503
        %v505 = vpop.f32.mrf.mxu0
        %v506 = vadd.f32 0.0, %v505
        %507 = vmatmul.bf16.gmra.mxu0 %v473
        %v508 = vpop.f32.mrf.mxu0
        %v509 = vadd.f32 0.0, %v508
        %v510 = vpop.f32.mrf.mxu0
        %v511 = vadd.f32 0.0, %v510
        %512 = vdwg.mxu0
        %513 = vmatpush.bf16.msra.mxu0 0
        %514 = vmatpush.bf16.msra.mxu0 0
        %515 = vmatpush.bf16.msra.mxu0 0
        %516 = vmatpush.bf16.msra.mxu0 0
        %517 = vmatpush.bf16.msra.mxu0 0
        %518 = vmatpush.bf16.msra.mxu0 0
        %519 = vmatpush.bf16.msra.mxu0 %v458
        %520 = vmatpush.bf16.msra.mxu0 %v454
        %521 = vmatmul.bf16.gmra.mxu0 %v470
        %v522 = vpop.f32.mrf.mxu0
        %v523 = vadd.f32 0.0, %v522
        %v524 = vpop.f32.mrf.mxu0
        %v525 = vadd.f32 0.0, %v524
        %526 = vmatmul.bf16.gmra.mxu0 %v473
        %v527 = vpop.f32.mrf.mxu0
        %v528 = vadd.f32 0.0, %v527
        %v529 = vpop.f32.mrf.mxu0
        %v530 = vadd.f32 0.0, %v529
        %531 = vdwg.mxu0
        %532 = vmatpush.bf16.msra.mxu0 0
        %533 = vmatpush.bf16.msra.mxu0 0
        %534 = vmatpush.bf16.msra.mxu0 0
        %535 = vmatpush.bf16.msra.mxu0 0
        %536 = vmatpush.bf16.msra.mxu0 0
        %537 = vmatpush.bf16.msra.mxu0 0
        %538 = vmatpush.bf16.msra.mxu0 %v459
        %539 = vmatpush.bf16.msra.mxu0 %v455
        %540 = vmatmul.bf16.gmra.mxu0 %v470
        %v541 = vpop.f32.mrf.mxu0
        %v542 = vadd.f32 0.0, %v541
        %v543 = vpop.f32.mrf.mxu0
        %v544 = vadd.f32 0.0, %v543
        %545 = vmatmul.bf16.gmra.mxu0 %v473
        %v546 = vpop.f32.mrf.mxu0
        %v547 = vadd.f32 0.0, %v546
        %v548 = vpop.f32.mrf.mxu0
        %v549 = vadd.f32 0.0, %v548
        %550 = vdwg.mxu0
        %551 = vst [vmem:[#allocation6] sm:$0xff] %v485
        %552 = vst [vmem:[#allocation6 + $0x8] sm:$0xff] %v504
        %553 = vst [vmem:[#allocation6 + $0x10] sm:$0xff] %v523
        %554 = vst [vmem:[#allocation6 + $0x18] sm:$0xff] %v542
        %555 = vst [vmem:[#allocation6 + $0x20] sm:$0xff] %v487
        %556 = vst [vmem:[#allocation6 + $0x28] sm:$0xff] %v506
        %557 = vst [vmem:[#allocation6 + $0x30] sm:$0xff] %v525
        %558 = vst [vmem:[#allocation6 + $0x38] sm:$0xff] %v544
        %559 = vst [vmem:[#allocation6 + $0x40] sm:$0xff] %v490
        %560 = vst [vmem:[#allocation6 + $0x48] sm:$0xff] %v509
        %561 = vst [vmem:[#allocation6 + $0x50] sm:$0xff] %v528
        %562 = vst [vmem:[#allocation6 + $0x58] sm:$0xff] %v547
        %563 = vst [vmem:[#allocation6 + $0x60] sm:$0xff] %v492
        %564 = vst [vmem:[#allocation6 + $0x68] sm:$0xff] %v511
        %565 = vst [vmem:[#allocation6 + $0x70] sm:$0xff] %v530
        %566 = vst [vmem:[#allocation6 + $0x78] sm:$0xff] %v549
        %v567 = vld [vmem:[#allocation11] sm:$0xff]
        %v568 = vld [vmem:[#allocation11 + $0x8] sm:$0xff]
        %v569 = vld [vmem:[#allocation11 + $0x10] sm:$0xff]
        %v570 = vld [vmem:[#allocation11 + $0x18] sm:$0xff]
        %v571 = vld [vmem:[#allocation11 + $0x20] sm:$0xff]
        %v572 = vld [vmem:[#allocation11 + $0x28] sm:$0xff]
        %v573 = vld [vmem:[#allocation11 + $0x30] sm:$0xff]
        %v574 = vld [vmem:[#allocation11 + $0x38] sm:$0xff]
        %v575 = vld [vmem:[#allocation11 + $0x40] sm:$0xff]
        %v576 = vld [vmem:[#allocation11 + $0x48] sm:$0xff]
        %v577 = vld [vmem:[#allocation11 + $0x50] sm:$0xff]
        %v578 = vld [vmem:[#allocation11 + $0x58] sm:$0xff]
        %v579 = vld [vmem:[#allocation11 + $0x60] sm:$0xff]
        %v580 = vld [vmem:[#allocation11 + $0x68] sm:$0xff]
        %v581 = vld [vmem:[#allocation11 + $0x70] sm:$0xff]
        %v582 = vld [vmem:[#allocation11 + $0x78] sm:$0xff]
        %v583 = vld [vmem:[#allocation11 + $0x80] sm:$0xff]
        %v584 = vld [vmem:[#allocation11 + $0x88] sm:$0xff]
        %v585 = vld [vmem:[#allocation11 + $0x90] sm:$0xff]
        %v586 = vld [vmem:[#allocation11 + $0x98] sm:$0xff]
        %v587 = vld [vmem:[#allocation11 + $0xa0] sm:$0xff]
        %v588 = vld [vmem:[#allocation11 + $0xa8] sm:$0xff]
        %v589 = vld [vmem:[#allocation11 + $0xb0] sm:$0xff]
        %v590 = vld [vmem:[#allocation11 + $0xb8] sm:$0xff]
        %v591 = vld [vmem:[#allocation11 + $0xc0] sm:$0xff]
        %v592 = vld [vmem:[#allocation11 + $0xc8] sm:$0xff]
        %v593 = vld [vmem:[#allocation11 + $0xd0] sm:$0xff]
        %v594 = vld [vmem:[#allocation11 + $0xd8] sm:$0xff]
        %v595 = vld [vmem:[#allocation11 + $0xe0] sm:$0xff]
        %v596 = vld [vmem:[#allocation11 + $0xe8] sm:$0xff]
        %v597 = vld [vmem:[#allocation11 + $0xf0] sm:$0xff]
        %v598 = vld [vmem:[#allocation11 + $0xf8] sm:$0xff]
        %v599 = vld [vmem:[%s4] sm:$0xf]
        %v600 = vld [vmem:[%s5] sm:$0x1]
        %s601 = smul.u32 %s25, 4
        %v602 = vld [vmem:[#allocation2] sm:$0xff]
        %v603 = vld [vmem:[#allocation3] sm:$0xff]
        %v604 = vld [vmem:[#allocation4] sm:$0xff]
        %v605 = vld [vmem:[#allocation5] sm:$0xff]
        %s606 = smul.u32 0, 4
        %s607 = smul.addr %s606, 8
        %s608 = scalar_lea.vmem [#allocation6], %s607
        %v609 = vld [vmem:[%s608] sm:$0xff]
        %v610 = vld [vmem:[%s608 + $0x8] sm:$0xff]
        %v611 = vld [vmem:[%s608 + $0x10] sm:$0xff]
        %v612 = vld [vmem:[%s608 + $0x18] sm:$0xff]
        %v614 = vperm.slane %v599, 0
        %v615 = vperm.slane %v599, 1
        %v616 = vperm.slane %v599, 2
        %v617 = vperm.slane %v599, 3
        %v622 = vadd.f32 %v609, %v614
        %v623 = vadd.f32 %v610, %v615
        %v624 = vadd.f32 %v611, %v616
        %v625 = vadd.f32 %v612, %v617
        %v626 = vpack.c.bf16 %v602, %v602
        %v659 = vunpack.c.l.b16 %v567
        %v660 = vunpack.c.h.b16 %v567
        %v661 = vunpack.c.l.b16 %v568
        %v662 = vunpack.c.h.b16 %v568
        %v663 = vunpack.c.l.b16 %v569
        %v664 = vunpack.c.h.b16 %v569
        %v665 = vunpack.c.l.b16 %v570
        %v666 = vunpack.c.h.b16 %v570
        %v667 = vunpack.c.l.b16 %v571
        %v668 = vunpack.c.h.b16 %v571
        %v669 = vunpack.c.l.b16 %v572
        %v670 = vunpack.c.h.b16 %v572
        %v671 = vunpack.c.l.b16 %v573
        %v672 = vunpack.c.h.b16 %v573
        %v673 = vunpack.c.l.b16 %v574
        %v674 = vunpack.c.h.b16 %v574
        %v675 = vunpack.c.l.b16 %v575
        %v676 = vunpack.c.h.b16 %v575
        %v677 = vunpack.c.l.b16 %v576
        %v678 = vunpack.c.h.b16 %v576
        %v679 = vunpack.c.l.b16 %v577
        %v680 = vunpack.c.h.b16 %v577
        %v681 = vunpack.c.l.b16 %v578
        %v682 = vunpack.c.h.b16 %v578
        %v683 = vunpack.c.l.b16 %v579
        %v684 = vunpack.c.h.b16 %v579
        %v685 = vunpack.c.l.b16 %v580
        %v686 = vunpack.c.h.b16 %v580
        %v687 = vunpack.c.l.b16 %v581
        %v688 = vunpack.c.h.b16 %v581
        %v689 = vunpack.c.l.b16 %v582
        %v690 = vunpack.c.h.b16 %v582
        %v691 = vunpack.c.l.b16 %v583
        %v692 = vunpack.c.h.b16 %v583
        %v693 = vunpack.c.l.b16 %v584
        %v694 = vunpack.c.h.b16 %v584
        %v695 = vunpack.c.l.b16 %v585
        %v696 = vunpack.c.h.b16 %v585
        %v697 = vunpack.c.l.b16 %v586
        %v698 = vunpack.c.h.b16 %v586
        %v699 = vunpack.c.l.b16 %v587
        %v700 = vunpack.c.h.b16 %v587
        %v701 = vunpack.c.l.b16 %v588
        %v702 = vunpack.c.h.b16 %v588
        %v703 = vunpack.c.l.b16 %v589
        %v704 = vunpack.c.h.b16 %v589
        %v705 = vunpack.c.l.b16 %v590
        %v706 = vunpack.c.h.b16 %v590
        %v707 = vunpack.c.l.b16 %v591
        %v708 = vunpack.c.h.b16 %v591
        %v709 = vunpack.c.l.b16 %v592
        %v710 = vunpack.c.h.b16 %v592
        %v711 = vunpack.c.l.b16 %v593
        %v712 = vunpack.c.h.b16 %v593
        %v713 = vunpack.c.l.b16 %v594
        %v714 = vunpack.c.h.b16 %v594
        %v715 = vunpack.c.l.b16 %v595
        %v716 = vunpack.c.h.b16 %v595
        %v717 = vunpack.c.l.b16 %v596
        %v718 = vunpack.c.h.b16 %v596
        %v719 = vunpack.c.l.b16 %v597
        %v720 = vunpack.c.h.b16 %v597
        %v721 = vunpack.c.l.b16 %v598
        %v722 = vunpack.c.h.b16 %v598
        %v723 = vpack.c.b16 %v663, %v659
        %v724 = vpack.c.b16 %v664, %v660
        %v725 = vpack.c.b16 %v665, %v661
        %v726 = vpack.c.b16 %v666, %v662
        %v727 = vpack.c.b16 %v671, %v667
        %v728 = vpack.c.b16 %v672, %v668
        %v729 = vpack.c.b16 %v673, %v669
        %v730 = vpack.c.b16 %v674, %v670
        %v731 = vpack.c.b16 %v679, %v675
        %v732 = vpack.c.b16 %v680, %v676
        %v733 = vpack.c.b16 %v681, %v677
        %v734 = vpack.c.b16 %v682, %v678
        %v735 = vpack.c.b16 %v687, %v683
        %v736 = vpack.c.b16 %v688, %v684
        %v737 = vpack.c.b16 %v689, %v685
        %v738 = vpack.c.b16 %v690, %v686
        %v739 = vpack.c.b16 %v695, %v691
        %v740 = vpack.c.b16 %v696, %v692
        %v741 = vpack.c.b16 %v697, %v693
        %v742 = vpack.c.b16 %v698, %v694
        %v743 = vpack.c.b16 %v703, %v699
        %v744 = vpack.c.b16 %v704, %v700
        %v745 = vpack.c.b16 %v705, %v701
        %v746 = vpack.c.b16 %v706, %v702
        %v747 = vpack.c.b16 %v711, %v707
        %v748 = vpack.c.b16 %v712, %v708
        %v749 = vpack.c.b16 %v713, %v709
        %v750 = vpack.c.b16 %v714, %v710
        %v751 = vpack.c.b16 %v719, %v715
        %v752 = vpack.c.b16 %v720, %v716
        %v753 = vpack.c.b16 %v721, %v717
        %v754 = vpack.c.b16 %v722, %v718
        %787 = vmatpush.bf16.msra.mxu0 %v751
        %788 = vmatpush.bf16.msra.mxu0 %v747
        %789 = vmatpush.bf16.msra.mxu0 %v743
        %790 = vmatpush.bf16.msra.mxu0 %v739
        %791 = vmatpush.bf16.msra.mxu0 %v735
        %792 = vmatpush.bf16.msra.mxu0 %v731
        %793 = vmatpush.bf16.msra.mxu0 %v727
        %794 = vmatpush.bf16.msra.mxu0 %v723
        %795 = vmatmul.bf16.gmra.mxu0 %v626
        %v796 = vpop.f32.mrf.mxu0
        %v797 = vadd.f32 0.0, %v796
        %v798 = vpop.f32.mrf.mxu0
        %799 = vdwg.mxu0
        %800 = vmatpush.bf16.msra.mxu0 %v752
        %801 = vmatpush.bf16.msra.mxu0 %v748
        %802 = vmatpush.bf16.msra.mxu0 %v744
        %803 = vmatpush.bf16.msra.mxu0 %v740
        %804 = vmatpush.bf16.msra.mxu0 %v736
        %805 = vmatpush.bf16.msra.mxu0 %v732
        %806 = vmatpush.bf16.msra.mxu0 %v728
        %807 = vmatpush.bf16.msra.mxu0 %v724
        %808 = vmatmul.bf16.gmra.mxu0 %v626
        %v809 = vpop.f32.mrf.mxu0
        %v810 = vadd.f32 0.0, %v809
        %v811 = vpop.f32.mrf.mxu0
        %812 = vdwg.mxu0
        %813 = vmatpush.bf16.msra.mxu0 %v753
        %814 = vmatpush.bf16.msra.mxu0 %v749
        %815 = vmatpush.bf16.msra.mxu0 %v745
        %816 = vmatpush.bf16.msra.mxu0 %v741
        %817 = vmatpush.bf16.msra.mxu0 %v737
        %818 = vmatpush.bf16.msra.mxu0 %v733
        %819 = vmatpush.bf16.msra.mxu0 %v729
        %820 = vmatpush.bf16.msra.mxu0 %v725
        %821 = vmatmul.bf16.gmra.mxu0 %v626
        %v822 = vpop.f32.mrf.mxu0
        %v823 = vadd.f32 0.0, %v822
        %v824 = vpop.f32.mrf.mxu0
        %825 = vdwg.mxu0
        %826 = vmatpush.bf16.msra.mxu0 %v754
        %827 = vmatpush.bf16.msra.mxu0 %v750
        %828 = vmatpush.bf16.msra.mxu0 %v746
        %829 = vmatpush.bf16.msra.mxu0 %v742
        %830 = vmatpush.bf16.msra.mxu0 %v738
        %831 = vmatpush.bf16.msra.mxu0 %v734
        %832 = vmatpush.bf16.msra.mxu0 %v730
        %833 = vmatpush.bf16.msra.mxu0 %v726
        %834 = vmatmul.bf16.gmra.mxu0 %v626
        %v835 = vpop.f32.mrf.mxu0
        %v836 = vadd.f32 0.0, %v835
        %v837 = vpop.f32.mrf.mxu0
        %838 = vdwg.mxu0
        %v839 = vadd.f32 %v622, %v797
        %v840 = vadd.f32 %v623, %v810
        %v841 = vadd.f32 %v624, %v823
        %v842 = vadd.f32 %v625, %v836
        %v843 = vsub.f32 0.0, %v839
        %v844 = vmul.f32 %v843, 1.442695
        %v845 = vpow.pop %v844
        %v846 = vadd.f32 %v845, 1.0
        %v847 = vrcp.pop %v846
        %v848 = vmul.f32 %v846, %v847
        %v849 = vsub.f32 1.0, %v848
        %v850 = vmul.f32 %v847, %v849
        %v851 = vadd.f32 %v847, %v850
        %vm852 = vweird.f32 %v846
        %vm853 = vweird.f32 %v847
        %vm854 = vmor %vm852, %vm853
        %v855 = vsel %vm854, %v847, %v851
        %v856 = vand.u32 2147483647, %v846
        %vm857 = vcmp.eq.f32.partialorder %v856, 8.507059e+37
        %v858 = vand.u32 %v846, 2147483648
        %v859 = vor.u32 1.1754944e-38, %v858
        %v860 = vsel %vm857, %v859, %v855
        %v861 = vmul.f32 1.0, %v860
        %v862 = vsub.f32 0.0, %v840
        %v863 = vmul.f32 %v862, 1.442695
        %v864 = vpow.pop %v863
        %v865 = vadd.f32 %v864, 1.0
        %v866 = vrcp.pop %v865
        %v867 = vmul.f32 %v865, %v866
        %v868 = vsub.f32 1.0, %v867
        %v869 = vmul.f32 %v866, %v868
        %v870 = vadd.f32 %v866, %v869
        %vm871 = vweird.f32 %v865
        %vm872 = vweird.f32 %v866
        %vm873 = vmor %vm871, %vm872
        %v874 = vsel %vm873, %v866, %v870
        %v875 = vand.u32 2147483647, %v865
        %vm876 = vcmp.eq.f32.partialorder %v875, 8.507059e+37
        %v877 = vand.u32 %v865, 2147483648
        %v878 = vor.u32 1.1754944e-38, %v877
        %v879 = vsel %vm876, %v878, %v874
        %v880 = vmul.f32 1.0, %v879
        %v881 = vtanh.pop %v841
        %v882 = vsub.f32 0.0, %v842
        %v883 = vmul.f32 %v882, 1.442695
        %v884 = vpow.pop %v883
        %v885 = vadd.f32 %v884, 1.0
        %v886 = vrcp.pop %v885
        %v887 = vmul.f32 %v885, %v886
        %v888 = vsub.f32 1.0, %v887
        %v889 = vmul.f32 %v886, %v888
        %v890 = vadd.f32 %v886, %v889
        %vm891 = vweird.f32 %v885
        %vm892 = vweird.f32 %v886
        %vm893 = vmor %vm891, %vm892
        %v894 = vsel %vm893, %v886, %v890
        %v895 = vand.u32 2147483647, %v885
        %vm896 = vcmp.eq.f32.partialorder %v895, 8.507059e+37
        %v897 = vand.u32 %v885, 2147483648
        %v898 = vor.u32 1.1754944e-38, %v897
        %v899 = vsel %vm896, %v898, %v894
        %v900 = vmul.f32 1.0, %v899
        %v901 = vmul.f32 %v880, %v603
        %v902 = vmul.f32 %v861, %v881
        %v903 = vadd.f32 %v901, %v902
        %v904 = vtanh.pop %v903
        %v905 = vmul.f32 %v900, %v904
        %v907 = vperm.slane %v600, 0
        %v909 = vmul.f32 %v905, %v907
        %910 = vadd.xlane.f32.xlu0 %v909
        %v911 = vpop.xlane.xlu0 %910
        %s912 = sld [smem:[#allocation7 + %s601]]
        %v913 = vstv %s912
        %v914 = vadd.f32 %v911, %v913
        %v915 = vtanh.pop %v914
        %v916 = vmul.f32 %v915, 1.442695
        %v917 = vpow.pop %v916
        %v918 = vadd.f32 %v604, %v917
        %v919 = vmul.f32 %v917, %v905
        %v920 = vadd.f32 %v605, %v919
        %s921 = smul.u32 1, 4
        %s922 = smul.addr %s921, 8
        %s923 = scalar_lea.vmem [#allocation6], %s922
        %v924 = vld [vmem:[%s923] sm:$0xff]
        %v925 = vld [vmem:[%s923 + $0x8] sm:$0xff]
        %v926 = vld [vmem:[%s923 + $0x10] sm:$0xff]
        %v927 = vld [vmem:[%s923 + $0x18] sm:$0xff]
        %v928 = vadd.f32 %v924, %v614
        %v929 = vadd.f32 %v925, %v615
        %v930 = vadd.f32 %v926, %v616
        %v931 = vadd.f32 %v927, %v617
        %v932 = vpack.c.bf16 %v905, %v905
        %933 = vmatpush.bf16.msra.mxu0 %v751
        %934 = vmatpush.bf16.msra.mxu0 %v747
        %935 = vmatpush.bf16.msra.mxu0 %v743
        %936 = vmatpush.bf16.msra.mxu0 %v739
        %937 = vmatpush.bf16.msra.mxu0 %v735
        %938 = vmatpush.bf16.msra.mxu0 %v731
        %939 = vmatpush.bf16.msra.mxu0 %v727
        %940 = vmatpush.bf16.msra.mxu0 %v723
        %941 = vmatmul.bf16.gmra.mxu0 %v932
        %v942 = vpop.f32.mrf.mxu0
        %v943 = vadd.f32 0.0, %v942
        %v944 = vpop.f32.mrf.mxu0
        %945 = vdwg.mxu0
        %946 = vmatpush.bf16.msra.mxu0 %v752
        %947 = vmatpush.bf16.msra.mxu0 %v748
        %948 = vmatpush.bf16.msra.mxu0 %v744
        %949 = vmatpush.bf16.msra.mxu0 %v740
        %950 = vmatpush.bf16.msra.mxu0 %v736
        %951 = vmatpush.bf16.msra.mxu0 %v732
        %952 = vmatpush.bf16.msra.mxu0 %v728
        %953 = vmatpush.bf16.msra.mxu0 %v724
        %954 = vmatmul.bf16.gmra.mxu0 %v932
        %v955 = vpop.f32.mrf.mxu0
        %v956 = vadd.f32 0.0, %v955
        %v957 = vpop.f32.mrf.mxu0
        %958 = vdwg.mxu0
        %959 = vmatpush.bf16.msra.mxu0 %v753
        %960 = vmatpush.bf16.msra.mxu0 %v749
        %961 = vmatpush.bf16.msra.mxu0 %v745
        %962 = vmatpush.bf16.msra.mxu0 %v741
        %963 = vmatpush.bf16.msra.mxu0 %v737
        %964 = vmatpush.bf16.msra.mxu0 %v733
        %965 = vmatpush.bf16.msra.mxu0 %v729
        %966 = vmatpush.bf16.msra.mxu0 %v725
        %967 = vmatmul.bf16.gmra.mxu0 %v932
        %v968 = vpop.f32.mrf.mxu0
        %v969 = vadd.f32 0.0, %v968
        %v970 = vpop.f32.mrf.mxu0
        %971 = vdwg.mxu0
        %972 = vmatpush.bf16.msra.mxu0 %v754
        %973 = vmatpush.bf16.msra.mxu0 %v750
        %974 = vmatpush.bf16.msra.mxu0 %v746
        %975 = vmatpush.bf16.msra.mxu0 %v742
        %976 = vmatpush.bf16.msra.mxu0 %v738
        %977 = vmatpush.bf16.msra.mxu0 %v734
        %978 = vmatpush.bf16.msra.mxu0 %v730
        %979 = vmatpush.bf16.msra.mxu0 %v726
        %980 = vmatmul.bf16.gmra.mxu0 %v932
        %v981 = vpop.f32.mrf.mxu0
        %v982 = vadd.f32 0.0, %v981
        %v983 = vpop.f32.mrf.mxu0
        %984 = vdwg.mxu0
        %v985 = vadd.f32 %v928, %v943
        %v986 = vadd.f32 %v929, %v956
        %v987 = vadd.f32 %v930, %v969
        %v988 = vadd.f32 %v931, %v982
        %v989 = vsub.f32 0.0, %v985
        %v990 = vmul.f32 %v989, 1.442695
        %v991 = vpow.pop %v990
        %v992 = vadd.f32 %v991, 1.0
        %v993 = vrcp.pop %v992
        %v994 = vmul.f32 %v992, %v993
        %v995 = vsub.f32 1.0, %v994
        %v996 = vmul.f32 %v993, %v995
        %v997 = vadd.f32 %v993, %v996
        %vm998 = vweird.f32 %v992
        %vm999 = vweird.f32 %v993
        %vm1000 = vmor %vm998, %vm999
        %v1001 = vsel %vm1000, %v993, %v997
        %v1002 = vand.u32 2147483647, %v992
        %vm1003 = vcmp.eq.f32.partialorder %v1002, 8.507059e+37
        %v1004 = vand.u32 %v992, 2147483648
        %v1005 = vor.u32 1.1754944e-38, %v1004
        %v1006 = vsel %vm1003, %v1005, %v1001
        %v1007 = vmul.f32 1.0, %v1006
        %v1008 = vsub.f32 0.0, %v986
        %v1009 = vmul.f32 %v1008, 1.442695
        %v1010 = vpow.pop %v1009
        %v1011 = vadd.f32 %v1010, 1.0
        %v1012 = vrcp.pop %v1011
        %v1013 = vmul.f32 %v1011, %v1012
        %v1014 = vsub.f32 1.0, %v1013
        %v1015 = vmul.f32 %v1012, %v1014
        %v1016 = vadd.f32 %v1012, %v1015
        %vm1017 = vweird.f32 %v1011
        %vm1018 = vweird.f32 %v1012
        %vm1019 = vmor %vm1017, %vm1018
        %v1020 = vsel %vm1019, %v1012, %v1016
        %v1021 = vand.u32 2147483647, %v1011
        %vm1022 = vcmp.eq.f32.partialorder %v1021, 8.507059e+37
        %v1023 = vand.u32 %v1011, 2147483648
        %v1024 = vor.u32 1.1754944e-38, %v1023
        %v1025 = vsel %vm1022, %v1024, %v1020
        %v1026 = vmul.f32 1.0, %v1025
        %v1027 = vtanh.pop %v987
        %v1028 = vsub.f32 0.0, %v988
        %v1029 = vmul.f32 %v1028, 1.442695
        %v1030 = vpow.pop %v1029
        %v1031 = vadd.f32 %v1030, 1.0
        %v1032 = vrcp.pop %v1031
        %v1033 = vmul.f32 %v1031, %v1032
        %v1034 = vsub.f32 1.0, %v1033
        %v1035 = vmul.f32 %v1032, %v1034
        %v1036 = vadd.f32 %v1032, %v1035
        %vm1037 = vweird.f32 %v1031
        %vm1038 = vweird.f32 %v1032
        %vm1039 = vmor %vm1037, %vm1038
        %v1040 = vsel %vm1039, %v1032, %v1036
        %v1041 = vand.u32 2147483647, %v1031
        %vm1042 = vcmp.eq.f32.partialorder %v1041, 8.507059e+37
        %v1043 = vand.u32 %v1031, 2147483648
        %v1044 = vor.u32 1.1754944e-38, %v1043
        %v1045 = vsel %vm1042, %v1044, %v1040
        %v1046 = vmul.f32 1.0, %v1045
        %v1047 = vmul.f32 %v1026, %v903
        %v1048 = vmul.f32 %v1007, %v1027
        %v1049 = vadd.f32 %v1047, %v1048
        %v1050 = vtanh.pop %v1049
        %v1051 = vmul.f32 %v1046, %v1050
        %v1052 = vmul.f32 %v1051, %v907
        %1053 = vadd.xlane.f32.xlu0 %v1052
        %v1054 = vpop.xlane.xlu0 %1053
        %s1055 = sadd.s32 %s601, 1
        %s1056 = sld [smem:[#allocation7 + %s1055]]
        %v1057 = vstv %s1056
        %v1058 = vadd.f32 %v1054, %v1057
        %v1059 = vtanh.pop %v1058
        %v1060 = vmul.f32 %v1059, 1.442695
        %v1061 = vpow.pop %v1060
        %v1062 = vadd.f32 %v918, %v1061
        %v1063 = vmul.f32 %v1061, %v1051
        %v1064 = vadd.f32 %v920, %v1063
        %s1065 = smul.u32 2, 4
        %s1066 = smul.addr %s1065, 8
        %s1067 = scalar_lea.vmem [#allocation6], %s1066
        %v1068 = vld [vmem:[%s1067] sm:$0xff]
        %v1069 = vld [vmem:[%s1067 + $0x8] sm:$0xff]
        %v1070 = vld [vmem:[%s1067 + $0x10] sm:$0xff]
        %v1071 = vld [vmem:[%s1067 + $0x18] sm:$0xff]
        %v1072 = vadd.f32 %v1068, %v614
        %v1073 = vadd.f32 %v1069, %v615
        %v1074 = vadd.f32 %v1070, %v616
        %v1075 = vadd.f32 %v1071, %v617
        %v1076 = vpack.c.bf16 %v1051, %v1051
        %1077 = vmatpush.bf16.msra.mxu0 %v751
        %1078 = vmatpush.bf16.msra.mxu0 %v747
        %1079 = vmatpush.bf16.msra.mxu0 %v743
        %1080 = vmatpush.bf16.msra.mxu0 %v739
        %1081 = vmatpush.bf16.msra.mxu0 %v735
        %1082 = vmatpush.bf16.msra.mxu0 %v731
        %1083 = vmatpush.bf16.msra.mxu0 %v727
        %1084 = vmatpush.bf16.msra.mxu0 %v723
        %1085 = vmatmul.bf16.gmra.mxu0 %v1076
        %v1086 = vpop.f32.mrf.mxu0
        %v1087 = vadd.f32 0.0, %v1086
        %v1088 = vpop.f32.mrf.mxu0
        %1089 = vdwg.mxu0
        %1090 = vmatpush.bf16.msra.mxu0 %v752
        %1091 = vmatpush.bf16.msra.mxu0 %v748
        %1092 = vmatpush.bf16.msra.mxu0 %v744
        %1093 = vmatpush.bf16.msra.mxu0 %v740
        %1094 = vmatpush.bf16.msra.mxu0 %v736
        %1095 = vmatpush.bf16.msra.mxu0 %v732
        %1096 = vmatpush.bf16.msra.mxu0 %v728
        %1097 = vmatpush.bf16.msra.mxu0 %v724
        %1098 = vmatmul.bf16.gmra.mxu0 %v1076
        %v1099 = vpop.f32.mrf.mxu0
        %v1100 = vadd.f32 0.0, %v1099
        %v1101 = vpop.f32.mrf.mxu0
        %1102 = vdwg.mxu0
        %1103 = vmatpush.bf16.msra.mxu0 %v753
        %1104 = vmatpush.bf16.msra.mxu0 %v749
        %1105 = vmatpush.bf16.msra.mxu0 %v745
        %1106 = vmatpush.bf16.msra.mxu0 %v741
        %1107 = vmatpush.bf16.msra.mxu0 %v737
        %1108 = vmatpush.bf16.msra.mxu0 %v733
        %1109 = vmatpush.bf16.msra.mxu0 %v729
        %1110 = vmatpush.bf16.msra.mxu0 %v725
        %1111 = vmatmul.bf16.gmra.mxu0 %v1076
        %v1112 = vpop.f32.mrf.mxu0
        %v1113 = vadd.f32 0.0, %v1112
        %v1114 = vpop.f32.mrf.mxu0
        %1115 = vdwg.mxu0
        %1116 = vmatpush.bf16.msra.mxu0 %v754
        %1117 = vmatpush.bf16.msra.mxu0 %v750
        %1118 = vmatpush.bf16.msra.mxu0 %v746
        %1119 = vmatpush.bf16.msra.mxu0 %v742
        %1120 = vmatpush.bf16.msra.mxu0 %v738
        %1121 = vmatpush.bf16.msra.mxu0 %v734
        %1122 = vmatpush.bf16.msra.mxu0 %v730
        %1123 = vmatpush.bf16.msra.mxu0 %v726
        %1124 = vmatmul.bf16.gmra.mxu0 %v1076
        %v1125 = vpop.f32.mrf.mxu0
        %v1126 = vadd.f32 0.0, %v1125
        %v1127 = vpop.f32.mrf.mxu0
        %1128 = vdwg.mxu0
        %v1129 = vadd.f32 %v1072, %v1087
        %v1130 = vadd.f32 %v1073, %v1100
        %v1131 = vadd.f32 %v1074, %v1113
        %v1132 = vadd.f32 %v1075, %v1126
        %v1133 = vsub.f32 0.0, %v1129
        %v1134 = vmul.f32 %v1133, 1.442695
        %v1135 = vpow.pop %v1134
        %v1136 = vadd.f32 %v1135, 1.0
        %v1137 = vrcp.pop %v1136
        %v1138 = vmul.f32 %v1136, %v1137
        %v1139 = vsub.f32 1.0, %v1138
        %v1140 = vmul.f32 %v1137, %v1139
        %v1141 = vadd.f32 %v1137, %v1140
        %vm1142 = vweird.f32 %v1136
        %vm1143 = vweird.f32 %v1137
        %vm1144 = vmor %vm1142, %vm1143
        %v1145 = vsel %vm1144, %v1137, %v1141
        %v1146 = vand.u32 2147483647, %v1136
        %vm1147 = vcmp.eq.f32.partialorder %v1146, 8.507059e+37
        %v1148 = vand.u32 %v1136, 2147483648
        %v1149 = vor.u32 1.1754944e-38, %v1148
        %v1150 = vsel %vm1147, %v1149, %v1145
        %v1151 = vmul.f32 1.0, %v1150
        %v1152 = vsub.f32 0.0, %v1130
        %v1153 = vmul.f32 %v1152, 1.442695
        %v1154 = vpow.pop %v1153
        %v1155 = vadd.f32 %v1154, 1.0
        %v1156 = vrcp.pop %v1155
        %v1157 = vmul.f32 %v1155, %v1156
        %v1158 = vsub.f32 1.0, %v1157
        %v1159 = vmul.f32 %v1156, %v1158
        %v1160 = vadd.f32 %v1156, %v1159
        %vm1161 = vweird.f32 %v1155
        %vm1162 = vweird.f32 %v1156
        %vm1163 = vmor %vm1161, %vm1162
        %v1164 = vsel %vm1163, %v1156, %v1160
        %v1165 = vand.u32 2147483647, %v1155
        %vm1166 = vcmp.eq.f32.partialorder %v1165, 8.507059e+37
        %v1167 = vand.u32 %v1155, 2147483648
        %v1168 = vor.u32 1.1754944e-38, %v1167
        %v1169 = vsel %vm1166, %v1168, %v1164
        %v1170 = vmul.f32 1.0, %v1169
        %v1171 = vtanh.pop %v1131
        %v1172 = vsub.f32 0.0, %v1132
        %v1173 = vmul.f32 %v1172, 1.442695
        %v1174 = vpow.pop %v1173
        %v1175 = vadd.f32 %v1174, 1.0
        %v1176 = vrcp.pop %v1175
        %v1177 = vmul.f32 %v1175, %v1176
        %v1178 = vsub.f32 1.0, %v1177
        %v1179 = vmul.f32 %v1176, %v1178
        %v1180 = vadd.f32 %v1176, %v1179
        %vm1181 = vweird.f32 %v1175
        %vm1182 = vweird.f32 %v1176
        %vm1183 = vmor %vm1181, %vm1182
        %v1184 = vsel %vm1183, %v1176, %v1180
        %v1185 = vand.u32 2147483647, %v1175
        %vm1186 = vcmp.eq.f32.partialorder %v1185, 8.507059e+37
        %v1187 = vand.u32 %v1175, 2147483648
        %v1188 = vor.u32 1.1754944e-38, %v1187
        %v1189 = vsel %vm1186, %v1188, %v1184
        %v1190 = vmul.f32 1.0, %v1189
        %v1191 = vmul.f32 %v1170, %v1049
        %v1192 = vmul.f32 %v1151, %v1171
        %v1193 = vadd.f32 %v1191, %v1192
        %v1194 = vtanh.pop %v1193
        %v1195 = vmul.f32 %v1190, %v1194
        %v1196 = vmul.f32 %v1195, %v907
        %1197 = vadd.xlane.f32.xlu0 %v1196
        %v1198 = vpop.xlane.xlu0 %1197
        %s1199 = sadd.s32 %s601, 2
        %s1200 = sld [smem:[#allocation7 + %s1199]]
        %v1201 = vstv %s1200
        %v1202 = vadd.f32 %v1198, %v1201
        %v1203 = vtanh.pop %v1202
        %v1204 = vmul.f32 %v1203, 1.442695
        %v1205 = vpow.pop %v1204
        %v1206 = vadd.f32 %v1062, %v1205
        %v1207 = vmul.f32 %v1205, %v1195
        %v1208 = vadd.f32 %v1064, %v1207
        %s1209 = smul.u32 3, 4
        %s1210 = smul.addr %s1209, 8
        %s1211 = scalar_lea.vmem [#allocation6], %s1210
        %v1212 = vld [vmem:[%s1211] sm:$0xff]
        %v1213 = vld [vmem:[%s1211 + $0x8] sm:$0xff]
        %v1214 = vld [vmem:[%s1211 + $0x10] sm:$0xff]
        %v1215 = vld [vmem:[%s1211 + $0x18] sm:$0xff]
        %v1216 = vadd.f32 %v1212, %v614
        %v1217 = vadd.f32 %v1213, %v615
        %v1218 = vadd.f32 %v1214, %v616
        %v1219 = vadd.f32 %v1215, %v617
        %v1220 = vpack.c.bf16 %v1195, %v1195
        %1221 = vmatpush.bf16.msra.mxu0 %v751
        %1222 = vmatpush.bf16.msra.mxu0 %v747
        %1223 = vmatpush.bf16.msra.mxu0 %v743
        %1224 = vmatpush.bf16.msra.mxu0 %v739
        %1225 = vmatpush.bf16.msra.mxu0 %v735
        %1226 = vmatpush.bf16.msra.mxu0 %v731
        %1227 = vmatpush.bf16.msra.mxu0 %v727
        %1228 = vmatpush.bf16.msra.mxu0 %v723
        %1229 = vmatmul.bf16.gmra.mxu0 %v1220
        %v1230 = vpop.f32.mrf.mxu0
        %v1231 = vadd.f32 0.0, %v1230
        %v1232 = vpop.f32.mrf.mxu0
        %1233 = vdwg.mxu0
        %1234 = vmatpush.bf16.msra.mxu0 %v752
        %1235 = vmatpush.bf16.msra.mxu0 %v748
        %1236 = vmatpush.bf16.msra.mxu0 %v744
        %1237 = vmatpush.bf16.msra.mxu0 %v740
        %1238 = vmatpush.bf16.msra.mxu0 %v736
        %1239 = vmatpush.bf16.msra.mxu0 %v732
        %1240 = vmatpush.bf16.msra.mxu0 %v728
        %1241 = vmatpush.bf16.msra.mxu0 %v724
        %1242 = vmatmul.bf16.gmra.mxu0 %v1220
        %v1243 = vpop.f32.mrf.mxu0
        %v1244 = vadd.f32 0.0, %v1243
        %v1245 = vpop.f32.mrf.mxu0
        %1246 = vdwg.mxu0
        %1247 = vmatpush.bf16.msra.mxu0 %v753
        %1248 = vmatpush.bf16.msra.mxu0 %v749
        %1249 = vmatpush.bf16.msra.mxu0 %v745
        %1250 = vmatpush.bf16.msra.mxu0 %v741
        %1251 = vmatpush.bf16.msra.mxu0 %v737
        %1252 = vmatpush.bf16.msra.mxu0 %v733
        %1253 = vmatpush.bf16.msra.mxu0 %v729
        %1254 = vmatpush.bf16.msra.mxu0 %v725
        %1255 = vmatmul.bf16.gmra.mxu0 %v1220
        %v1256 = vpop.f32.mrf.mxu0
        %v1257 = vadd.f32 0.0, %v1256
        %v1258 = vpop.f32.mrf.mxu0
        %1259 = vdwg.mxu0
        %1260 = vmatpush.bf16.msra.mxu0 %v754
        %1261 = vmatpush.bf16.msra.mxu0 %v750
        %1262 = vmatpush.bf16.msra.mxu0 %v746
        %1263 = vmatpush.bf16.msra.mxu0 %v742
        %1264 = vmatpush.bf16.msra.mxu0 %v738
        %1265 = vmatpush.bf16.msra.mxu0 %v734
        %1266 = vmatpush.bf16.msra.mxu0 %v730
        %1267 = vmatpush.bf16.msra.mxu0 %v726
        %1268 = vmatmul.bf16.gmra.mxu0 %v1220
        %v1269 = vpop.f32.mrf.mxu0
        %v1270 = vadd.f32 0.0, %v1269
        %v1271 = vpop.f32.mrf.mxu0
        %1272 = vdwg.mxu0
        %v1273 = vadd.f32 %v1216, %v1231
        %v1274 = vadd.f32 %v1217, %v1244
        %v1275 = vadd.f32 %v1218, %v1257
        %v1276 = vadd.f32 %v1219, %v1270
        %v1277 = vsub.f32 0.0, %v1273
        %v1278 = vmul.f32 %v1277, 1.442695
        %v1279 = vpow.pop %v1278
        %v1280 = vadd.f32 %v1279, 1.0
        %v1281 = vrcp.pop %v1280
        %v1282 = vmul.f32 %v1280, %v1281
        %v1283 = vsub.f32 1.0, %v1282
        %v1284 = vmul.f32 %v1281, %v1283
        %v1285 = vadd.f32 %v1281, %v1284
        %vm1286 = vweird.f32 %v1280
        %vm1287 = vweird.f32 %v1281
        %vm1288 = vmor %vm1286, %vm1287
        %v1289 = vsel %vm1288, %v1281, %v1285
        %v1290 = vand.u32 2147483647, %v1280
        %vm1291 = vcmp.eq.f32.partialorder %v1290, 8.507059e+37
        %v1292 = vand.u32 %v1280, 2147483648
        %v1293 = vor.u32 1.1754944e-38, %v1292
        %v1294 = vsel %vm1291, %v1293, %v1289
        %v1295 = vmul.f32 1.0, %v1294
        %v1296 = vsub.f32 0.0, %v1274
        %v1297 = vmul.f32 %v1296, 1.442695
        %v1298 = vpow.pop %v1297
        %v1299 = vadd.f32 %v1298, 1.0
        %v1300 = vrcp.pop %v1299
        %v1301 = vmul.f32 %v1299, %v1300
        %v1302 = vsub.f32 1.0, %v1301
        %v1303 = vmul.f32 %v1300, %v1302
        %v1304 = vadd.f32 %v1300, %v1303
        %vm1305 = vweird.f32 %v1299
        %vm1306 = vweird.f32 %v1300
        %vm1307 = vmor %vm1305, %vm1306
        %v1308 = vsel %vm1307, %v1300, %v1304
        %v1309 = vand.u32 2147483647, %v1299
        %vm1310 = vcmp.eq.f32.partialorder %v1309, 8.507059e+37
        %v1311 = vand.u32 %v1299, 2147483648
        %v1312 = vor.u32 1.1754944e-38, %v1311
        %v1313 = vsel %vm1310, %v1312, %v1308
        %v1314 = vmul.f32 1.0, %v1313
        %v1315 = vtanh.pop %v1275
        %v1316 = vsub.f32 0.0, %v1276
        %v1317 = vmul.f32 %v1316, 1.442695
        %v1318 = vpow.pop %v1317
        %v1319 = vadd.f32 %v1318, 1.0
        %v1320 = vrcp.pop %v1319
        %v1321 = vmul.f32 %v1319, %v1320
        %v1322 = vsub.f32 1.0, %v1321
        %v1323 = vmul.f32 %v1320, %v1322
        %v1324 = vadd.f32 %v1320, %v1323
        %vm1325 = vweird.f32 %v1319
        %vm1326 = vweird.f32 %v1320
        %vm1327 = vmor %vm1325, %vm1326
        %v1328 = vsel %vm1327, %v1320, %v1324
        %v1329 = vand.u32 2147483647, %v1319
        %vm1330 = vcmp.eq.f32.partialorder %v1329, 8.507059e+37
        %v1331 = vand.u32 %v1319, 2147483648
        %v1332 = vor.u32 1.1754944e-38, %v1331
        %v1333 = vsel %vm1330, %v1332, %v1328
        %v1334 = vmul.f32 1.0, %v1333
        %v1335 = vmul.f32 %v1314, %v1193
        %v1336 = vmul.f32 %v1295, %v1315
        %v1337 = vadd.f32 %v1335, %v1336
        %v1338 = vtanh.pop %v1337
        %v1339 = vmul.f32 %v1334, %v1338
        %v1340 = vmul.f32 %v1339, %v907
        %1341 = vadd.xlane.f32.xlu0 %v1340
        %v1342 = vpop.xlane.xlu0 %1341
        %s1343 = sadd.s32 %s601, 3
        %s1344 = sld [smem:[#allocation7 + %s1343]]
        %v1345 = vstv %s1344
        %v1346 = vadd.f32 %v1342, %v1345
        %v1347 = vtanh.pop %v1346
        %v1348 = vmul.f32 %v1347, 1.442695
        %v1349 = vpow.pop %v1348
        %v1350 = vadd.f32 %v1206, %v1349
        %v1351 = vmul.f32 %v1349, %v1339
        %v1352 = vadd.f32 %v1208, %v1351
        %1353 = vst [vmem:[#allocation2] sm:$0xff] %v1339
        %1354 = vst [vmem:[#allocation3] sm:$0xff] %v1337
        %vm1355 = vcmask 7168
        %1356 = vst.msk [vmem:[#allocation4] sm:$0xff] %vm1355, %v1350
        %1357 = vst [vmem:[#allocation5] sm:$0xff] %v1352
        %p1358 = scmp.eq.s32.totalorder %s25, 1
        // Predicated region
        $region77: #{tpu_custom_call.1} parent=59 // pred_check
          %p1359 = pneg %p1358
        $region78: #{tpu_custom_call.1} parent=59 // pred_check_branch
          %1361 = sbr.rel (%p1359) target = $region80
        $region79: #{tpu_custom_call.1} parent=59 // pred_region
          %v1362 = vld [vmem:[#allocation5] sm:$0xff]
          %v1363 = vld [vmem:[#allocation4] sm:$0xff]
          %v1364 = vadd.f32 %v1363, 1e-10
          %1366 = vset.pattern.permute.xlu0 0
          %1367 = vperm.xlu0 %1366, %v1364
          %v1368 = vpop.permute.xlu0 %1367
          %v1370 = vrcp.pop %v1368
          %v1371 = vmul.f32 %v1368, %v1370
          %v1372 = vsub.f32 1.0, %v1371
          %v1373 = vmul.f32 %v1370, %v1372
          %v1374 = vadd.f32 %v1370, %v1373
          %vm1375 = vweird.f32 %v1368
          %vm1376 = vweird.f32 %v1370
          %vm1377 = vmor %vm1375, %vm1376
          %v1378 = vsel %vm1377, %v1370, %v1374
          %v1379 = vand.u32 2147483647, %v1368
          %vm1380 = vcmp.eq.f32.partialorder %v1379, 8.507059e+37
          %v1381 = vand.u32 %v1368, 2147483648
          %v1382 = vor.u32 1.1754944e-38, %v1381
          %v1383 = vsel %vm1380, %v1382, %v1378
          %v1384 = vmul.f32 %v1362, %v1383
          %v1385 = vpack.c.bf16 %v1384, %v1384
          %v1386 = vld [vmem:[#allocation12] sm:$0xf]
          %v1387 = vld [vmem:[#allocation12 + $0x4] sm:$0xf]
          %v1388 = vld [vmem:[#allocation12 + $0x8] sm:$0xf]
          %v1389 = vld [vmem:[#allocation12 + $0xc] sm:$0xf]
          %v1390 = vld [vmem:[#allocation12 + $0x10] sm:$0xf]
          %v1391 = vld [vmem:[#allocation12 + $0x14] sm:$0xf]
          %v1392 = vld [vmem:[#allocation12 + $0x18] sm:$0xf]
          %v1393 = vld [vmem:[#allocation12 + $0x1c] sm:$0xf]
          %v1394 = vld [vmem:[#allocation12 + $0x20] sm:$0xf]
          %v1395 = vld [vmem:[#allocation12 + $0x24] sm:$0xf]
          %v1396 = vld [vmem:[#allocation12 + $0x28] sm:$0xf]
          %v1397 = vld [vmem:[#allocation12 + $0x2c] sm:$0xf]
          %v1398 = vld [vmem:[#allocation12 + $0x30] sm:$0xf]
          %v1399 = vld [vmem:[#allocation12 + $0x34] sm:$0xf]
          %v1400 = vld [vmem:[#allocation12 + $0x38] sm:$0xf]
          %v1401 = vld [vmem:[#allocation12 + $0x3c] sm:$0xf]
          %v1402 = vld [vmem:[%s7] sm:$0x1]
          %v1404 = vperm.slane %v1402, 0
          %v1422 = vunpack.c.l.b16 %v1386
          %v1423 = vunpack.c.l.b16 %v1387
          %v1424 = vunpack.c.l.b16 %v1388
          %v1425 = vunpack.c.l.b16 %v1389
          %v1426 = vunpack.c.l.b16 %v1390
          %v1427 = vunpack.c.l.b16 %v1391
          %v1428 = vunpack.c.l.b16 %v1392
          %v1429 = vunpack.c.l.b16 %v1393
          %v1430 = vunpack.c.l.b16 %v1394
          %v1431 = vunpack.c.l.b16 %v1395
          %v1432 = vunpack.c.l.b16 %v1396
          %v1433 = vunpack.c.l.b16 %v1397
          %v1434 = vunpack.c.l.b16 %v1398
          %v1435 = vunpack.c.l.b16 %v1399
          %v1436 = vunpack.c.l.b16 %v1400
          %v1437 = vunpack.c.l.b16 %v1401
          %v1438 = vpack.c.b16 %v1423, %v1422
          %v1439 = vpack.c.b16 %v1425, %v1424
          %v1440 = vpack.c.b16 %v1427, %v1426
          %v1441 = vpack.c.b16 %v1429, %v1428
          %v1442 = vpack.c.b16 %v1431, %v1430
          %v1443 = vpack.c.b16 %v1433, %v1432
          %v1444 = vpack.c.b16 %v1435, %v1434
          %v1445 = vpack.c.b16 %v1437, %v1436
          %1454 = vmatpush.bf16.msra.mxu0 %v1445
          %1455 = vmatpush.bf16.msra.mxu0 %v1444
          %1456 = vmatpush.bf16.msra.mxu0 %v1443
          %1457 = vmatpush.bf16.msra.mxu0 %v1442
          %1458 = vmatpush.bf16.msra.mxu0 %v1441
          %1459 = vmatpush.bf16.msra.mxu0 %v1440
          %1460 = vmatpush.bf16.msra.mxu0 %v1439
          %1461 = vmatpush.bf16.msra.mxu0 %v1438
          %1462 = vmatmul.bf16.gmra.mxu0 %v1385
          %v1463 = vpop.f32.mrf.mxu0
          %v1464 = vadd.f32 %v1404, %v1463
          %v1465 = vpop.f32.mrf.mxu0
          %1466 = vdwg.mxu0
          %v1467 = vmax.f32 %v1464, 0.0
          %v1468 = vpack.c.bf16 %v1467, %v1467
          %v1469 = vld [vmem:[%s8] sm:$0xf]
          %v1470 = vld [vmem:[%s8 + $0x4] sm:$0xf]
          %v1471 = vld [vmem:[%s8 + $0x8] sm:$0xf]
          %v1472 = vld [vmem:[%s8 + $0xc] sm:$0xf]
          %v1473 = vld [vmem:[%s8 + $0x10] sm:$0xf]
          %v1474 = vld [vmem:[%s8 + $0x14] sm:$0xf]
          %v1475 = vld [vmem:[%s8 + $0x18] sm:$0xf]
          %v1476 = vld [vmem:[%s8 + $0x1c] sm:$0xf]
          %v1477 = vld [vmem:[%s8 + $0x20] sm:$0xf]
          %v1478 = vld [vmem:[%s8 + $0x24] sm:$0xf]
          %v1479 = vld [vmem:[%s8 + $0x28] sm:$0xf]
          %v1480 = vld [vmem:[%s8 + $0x2c] sm:$0xf]
          %v1481 = vld [vmem:[%s8 + $0x30] sm:$0xf]
          %v1482 = vld [vmem:[%s8 + $0x34] sm:$0xf]
          %v1483 = vld [vmem:[%s8 + $0x38] sm:$0xf]
          %v1484 = vld [vmem:[%s8 + $0x3c] sm:$0xf]
          %v1485 = vld [vmem:[%s9] sm:$0x1]
          %v1487 = vperm.slane %v1485, 0
          %v1505 = vunpack.c.l.b16 %v1469
          %v1506 = vunpack.c.l.b16 %v1470
          %v1507 = vunpack.c.l.b16 %v1471
          %v1508 = vunpack.c.l.b16 %v1472
          %v1509 = vunpack.c.l.b16 %v1473
          %v1510 = vunpack.c.l.b16 %v1474
          %v1511 = vunpack.c.l.b16 %v1475
          %v1512 = vunpack.c.l.b16 %v1476
          %v1513 = vunpack.c.l.b16 %v1477
          %v1514 = vunpack.c.l.b16 %v1478
          %v1515 = vunpack.c.l.b16 %v1479
          %v1516 = vunpack.c.l.b16 %v1480
          %v1517 = vunpack.c.l.b16 %v1481
          %v1518 = vunpack.c.l.b16 %v1482
          %v1519 = vunpack.c.l.b16 %v1483
          %v1520 = vunpack.c.l.b16 %v1484
          %v1521 = vpack.c.b16 %v1506, %v1505
          %v1522 = vpack.c.b16 %v1508, %v1507
          %v1523 = vpack.c.b16 %v1510, %v1509
          %v1524 = vpack.c.b16 %v1512, %v1511
          %v1525 = vpack.c.b16 %v1514, %v1513
          %v1526 = vpack.c.b16 %v1516, %v1515
          %v1527 = vpack.c.b16 %v1518, %v1517
          %v1528 = vpack.c.b16 %v1520, %v1519
          %1537 = vmatpush.bf16.msra.mxu0 %v1528
          %1538 = vmatpush.bf16.msra.mxu0 %v1527
          %1539 = vmatpush.bf16.msra.mxu0 %v1526
          %1540 = vmatpush.bf16.msra.mxu0 %v1525
          %1541 = vmatpush.bf16.msra.mxu0 %v1524
          %1542 = vmatpush.bf16.msra.mxu0 %v1523
          %1543 = vmatpush.bf16.msra.mxu0 %v1522
          %1544 = vmatpush.bf16.msra.mxu0 %v1521
          %1545 = vmatmul.bf16.gmra.mxu0 %v1468
          %v1546 = vpop.f32.mrf.mxu0
          %v1547 = vadd.f32 %v1487, %v1546
          %v1548 = vpop.f32.mrf.mxu0
          %1549 = vdwg.mxu0
          %vm1550 = vcmask 80896
          %1551 = vst.msk [vmem:[#allocation14] sm:$0xff] %vm1550, %v1547
        $region80: #{tpu_custom_call.1} parent=59 // pred_fallthru
          _
        // Predicated region
        $region81: #{tpu_custom_call.1} parent=59 // pred_check
          %p1552 = pneg %p253
        $region82: #{tpu_custom_call.1} parent=59 // pred_check_branch
          %1554 = sbr.rel (%p1552) target = $region84
        $region83: #{tpu_custom_call.1} parent=59 // pred_region
          %1556 = vsyncadd [#allocation9], 0
          %s1558 = sshll.u32 [#allocation14], 4
          %s1559 = int_to_ptr.vmem [resolvable:$true] %s1558
          %s1560 = sshll.u32 %s10, 4
          %s1561 = int_to_ptr.hbm [resolvable:$true] %s1560
          %1563 = dma.vmem_to_hbm [thread:$0]  %s1559, 128, %s1561, [#allocation9]
        $region84: #{tpu_custom_call.1} parent=59 // pred_fallthru
          _
        // Predicated region
        $region85: #{tpu_custom_call.1} parent=59 // pred_check
          %p1564 = pneg %p253
        $region86: #{tpu_custom_call.1} parent=59 // pred_check_branch
          %1566 = sbr.rel (%p1564) target = $region88
        $region87: #{tpu_custom_call.1} parent=59 // pred_region
          %1568 = dma.done [#allocation9], 128
        $region88: #{tpu_custom_call.1} parent=59 // pred_fallthru
          _
      $region60: #{tpu_custom_call.1} parent=5 // pred_fallthru
        _
      %p1569 = scmp.le.s32.totalorder 2, %s20
      // Predicated region
      $region89: #{tpu_custom_call.1} parent=5 // pred_check
        %p1570 = pneg %p1569
      $region90: #{tpu_custom_call.1} parent=5 // pred_check_branch
        %1572 = sbr.rel (%p1570) target = $region92
      $region91: #{tpu_custom_call.1} parent=5 // pred_region
        %s1573 = ssub.s32 %s20, 2
      $region92: #{tpu_custom_call.1} parent=5 // pred_fallthru
        _
    $region6: #{tpu_custom_call.1} parent=1 // loop_footer
      %s24 = sadd.s32 1, %s20
    $region7: #{tpu_custom_call.1} parent=1 // loop_footer_branch
      %19 = sbr.rel target = $region3
    $region8: #{tpu_custom_call.1} parent=1 // loop_exit
      _
    %1574 = vsyncpa [#allocation8], 1
    %s1575 = scalar_lea.sflag [#allocation8], 1
    %1576 = vsyncpa %s1575, 1
    %1577 = vsyncpa [#allocation13], 1
    %1578 = vsyncpa [#allocation9], 1
    %s1579 = scalar_lea.sflag [#allocation9], 1
    %1580 = vsyncpa %s1579, 1
    %1581 = vsyncpa [#allocation10], 1
    %s1582 = scalar_lea.sflag [#allocation10], 1
    %1583 = vsyncpa %s1582, 1

</llo_original>
